<compile_context>
chip_gen: v5e
topology: v5e:2x2
jax: 0.10.0
libtpu: 0.0.40
codegen_flags: <defaults>
</compile_context>

<pallas_src>
import jax
import jax.numpy as jnp
from jax.experimental import pallas as pl
from jax.experimental.pallas import tpu as pltpu


def _round_up(x, m):
    return ((x + m - 1) // m) * m


def make_gelan_kernel(use_mxu):
    """Build the GELAN-block kernel.

    use_mxu=True : each 1x1 conv is an MXU dot (bf16 operands, f32 acc); cv4
                   is a straight accumulation chain over the four W4 blocks.
    use_mxu=False: tiny-channel path — each conv is an unrolled chain of
                   per-input-channel VPU FMAs in f32 (no MXU round trips).
    """
    f32 = jnp.float32

    def kernel(x_ref,
               w1a_ref, b1a_ref, w1b_ref, b1b_ref,
               w2_ref, b2_ref, w3_ref, b3_ref,
               w4a_ref, w4b_ref, w4c_ref, w4d_ref, b4_ref,
               o_ref):
        def to_op(v):
            # Conv operands are bf16-valued; the VPU path computes in f32.
            v = v.astype(jnp.bfloat16)
            return v if use_mxu else v.astype(f32)

        def bcast_bias(b_ref, cols):
            return jnp.broadcast_to(b_ref[...], (b_ref.shape[0], cols))

        def contract(w_ref, v, acc):
            """acc + W @ v (per-pixel channel contraction)."""
            if use_mxu:
                return acc + jnp.dot(w_ref[...], v, preferred_element_type=f32)
            w = w_ref[...]                        # f32 holding bf16-rounded values
            for c in range(w.shape[1]):           # unrolled VPU FMA chain
                acc = acc + w[:, c:c + 1] * v[c:c + 1, :]
            return acc

        def silu(v):                              # f32 elementwise (EUP sigmoid)
            return v * jax.nn.sigmoid(v)

        x = to_op(x_ref[0])                       # (c_in, tm)
        cols = x.shape[-1]

        # cv1, pre-split into its two output halves (no mid-sublane slice).
        y1a = silu(contract(w1a_ref, x, bcast_bias(b1a_ref, cols)))   # (h, tm) f32
        y1b = silu(contract(w1b_ref, x, bcast_bias(b1b_ref, cols)))   # (h, tm) f32
        y1b_op = to_op(y1b)

        # cv2, cv3
        y2 = silu(contract(w2_ref, y1b_op, bcast_bias(b2_ref, cols)))  # (c_hid2, tm)
        y2_op = to_op(y2)
        y3 = silu(contract(w3_ref, y2_op, bcast_bias(b3_ref, cols)))   # (c_hid2, tm)

        # cv4 on cat([y1a, y1b, y2, y3]) as one accumulation chain over the
        # four pre-split W4 column blocks (in-place MRB accumulate on v7x).
        acc = bcast_bias(b4_ref, cols)
        acc = contract(w4a_ref, to_op(y1a), acc)
        acc = contract(w4b_ref, y1b_op, acc)
        acc = contract(w4c_ref, y2_op, acc)
        acc = contract(w4d_ref, to_op(y3), acc)
        o_ref[0] = silu(acc).astype(o_ref.dtype)  # (c_out, tm), lane-dense

    return kernel


def fold_bn(w, gamma, beta, mean, var, eps=1e-5):
    """Fold eval-mode BatchNorm into a bias-free 1x1 conv.

    w: (c_out, c_in).  Returns (w_folded (c_out, c_in), bias (c_out,))."""
    scale = gamma / jnp.sqrt(var + eps)
    return w * scale[:, None], beta - mean * scale


def make_params(key, c_in, c_out, c_hid1, c_hid2):
    """Deterministic synthetic weights; BN folded into each 1x1 conv."""
    dims = [
        ("1", c_in, c_hid1),
        ("2", c_hid1 // 2, c_hid2),
        ("3", c_hid2, c_hid2),
        ("4", c_hid1 + 2 * c_hid2, c_out),
    ]
    folded = {}
    for name, ci, co in dims:
        key, k_w, k_g, k_b, k_m, k_v = jax.random.split(key, 6)
        w = jax.random.normal(k_w, (co, ci), jnp.float32) * 0.2
        gamma = 1.0 + 0.1 * jax.random.normal(k_g, (co,), jnp.float32)
        beta = 0.1 * jax.random.normal(k_b, (co,), jnp.float32)
        mean = 0.1 * jax.random.normal(k_m, (co,), jnp.float32)
        var = jnp.abs(jax.random.normal(k_v, (co,), jnp.float32)) + 0.5
        wf, bf = fold_bn(w, gamma, beta, mean, var)
        folded[f"w{name}"] = wf
        folded[f"b{name}"] = bf
    return folded


def prepare_kernel_params(folded, *, c_hid1, c_hid2, mxu_channel_threshold=16):
    """Split W1/W4 on the host (no in-kernel slice/concat) and pick operand
    storage for the kernel path.

    Operands are bf16-valued in both paths; the tiny-channel VPU path stores
    them as f32 (holding bf16-rounded values) so the per-channel FMAs run
    natively on the f32 VALUs (v5e has no bf16 VPU) with no in-kernel casts.
    Biases stay f32 with shape (c, 1)."""
    c_in = folded["w1"].shape[1]
    c_out = folded["w4"].shape[0]
    use_mxu = max(c_in, c_hid1, c_hid2, c_out) > mxu_channel_threshold
    wdt = jnp.bfloat16 if use_mxu else jnp.float32
    wcast = lambda w: w.astype(jnp.bfloat16).astype(wdt)
    col = lambda b: b[:, None].astype(jnp.float32)
    h = c_hid1 // 2
    return {
        "w1a": wcast(folded["w1"][:h]), "b1a": col(folded["b1"][:h]),
        "w1b": wcast(folded["w1"][h:]), "b1b": col(folded["b1"][h:]),
        "w2": wcast(folded["w2"]), "b2": col(folded["b2"]),
        "w3": wcast(folded["w3"]), "b3": col(folded["b3"]),
        "w4a": wcast(folded["w4"][:, :h]),
        "w4b": wcast(folded["w4"][:, h:c_hid1]),
        "w4c": wcast(folded["w4"][:, c_hid1:c_hid1 + c_hid2]),
        "w4d": wcast(folded["w4"][:, c_hid1 + c_hid2:]),
        "b4": col(folded["b4"]),
    }


def gelan_block(x_nchw, kparams, *, tm=512, out_dtype=jnp.bfloat16):
    n, c_in, hh, ww = x_nchw.shape
    hw = hh * ww
    c_out = kparams["w4a"].shape[0]
    c_hid1 = 2 * kparams["w1a"].shape[0]
    c_hid2 = kparams["w2"].shape[0]
    use_mxu = kparams["w1a"].dtype == jnp.bfloat16

    # Pad pixels only to the lane width (128); Pallas masks the partial last
    # block, so at most 127 padded pixels per image (not a whole tile).
    hw_pad = _round_up(hw, 128)

    # Cap the pixel tile so live f32 intermediates (x, y1a, y1b, y2, y3, acc)
    # fit in ~48 of the 64 vregs and the kernel never goes spill-bound.
    live_ch = c_in + c_hid1 + 2 * c_hid2 + c_out
    tm_budget = max(128, ((48 * 4096) // (4 * live_ch)) // 128 * 128)
    tm_eff = max(128, min(tm, tm_budget, hw_pad))
    tm_eff = (tm_eff // 128) * 128

    # NCHW -> (N, C, HW): free reshape; channels on sublanes, pixels on lanes.
    # Feed the kernel bf16 (it truncates to bf16 operands anyway) -> half the
    # HBM read traffic; output is written as bf16 as well.
    x3 = x_nchw.reshape(n, c_in, hw).astype(jnp.bfloat16)
    if hw_pad != hw:
        x3 = jnp.pad(x3, ((0, 0), (0, 0), (0, hw_pad - hw)))

    weight_names = ["w1a", "b1a", "w1b", "b1b", "w2", "b2", "w3", "b3",
                    "w4a", "w4b", "w4c", "w4d", "b4"]
    weight_args = [kparams[k] for k in weight_names]
    full = lambda arr: pl.BlockSpec(arr.shape, lambda b, i: (0, 0))

    grid = (n, pl.cdiv(hw_pad, tm_eff))

    m_total = n * hw_pad
    flops = 2 * m_total * (c_in * c_hid1 + (c_hid1 // 2) * c_hid2
                           + c_hid2 * c_hid2 + (c_hid1 + 2 * c_hid2) * c_out)
    transcendentals = m_total * (c_hid1 + 2 * c_hid2 + c_out)
    w_bytes = sum(int(a.size) * a.dtype.itemsize for a in weight_args)
    out_itemsize = jnp.dtype(out_dtype).itemsize
    bytes_accessed = (int(x3.size) * x3.dtype.itemsize
                      + m_total * c_out * out_itemsize + w_bytes)

    # Explicit VMEM budget: double-buffered x/out tiles + weights + headroom,
    # kept well under v7x's 64 MiB physical VMEM (v5e default is only 16 MiB).
    in_tile_b = c_in * tm_eff * x3.dtype.itemsize
    out_tile_b = c_out * tm_eff * out_itemsize
    vmem_est = 2 * (in_tile_b + out_tile_b) + 2 * w_bytes
    vmem_limit = int(min(48 * 2**20, max(16 * 2**20, 8 * vmem_est)))

    out3 = pl.pallas_call(
        make_gelan_kernel(use_mxu),
        out_shape=jax.ShapeDtypeStruct((n, c_out, hw_pad), out_dtype),
        grid=grid,
        in_specs=[pl.BlockSpec((1, c_in, tm_eff), lambda b, i: (b, 0, i))]
                 + [full(a) for a in weight_args],
        out_specs=pl.BlockSpec((1, c_out, tm_eff), lambda b, i: (b, 0, i)),
        compiler_params=pltpu.CompilerParams(
            dimension_semantics=("parallel", "parallel"),
            vmem_limit_bytes=vmem_limit),
        cost_estimate=pl.CostEstimate(
            flops=int(flops), transcendentals=int(transcendentals),
            bytes_accessed=int(bytes_accessed)),
    )(x3, *weight_args)

    if hw_pad != hw:
        out3 = out3[:, :, :hw]
    return out3.reshape(n, c_out, hh, ww)


def ref_forward(x_nchw, folded, *, c_hid1, out_dtype=jnp.bfloat16):
    """Pure-JAX reference mirroring the kernel's numerics: bf16 conv
    operands, f32 accumulation, f32 SiLU, bf16 output."""
    n, c_in, hh, ww = x_nchw.shape
    cd = jnp.bfloat16
    x = x_nchw.reshape(n, c_in, hh * ww)

    def cbs(w, b, v):
        y = jnp.einsum("oc,ncm->nom", w.astype(cd), v.astype(cd),
                       preferred_element_type=jnp.float32) + b[None, :, None]
        return y * jax.nn.sigmoid(y)

    h = c_hid1 // 2
    y1 = cbs(folded["w1"], folded["b1"], x)
    a, b = y1[:, :h], y1[:, h:]
    y2 = cbs(folded["w2"], folded["b2"], b)
    y3 = cbs(folded["w3"], folded["b3"], y2)
    cat = jnp.concatenate([a, b, y2, y3], axis=1)
    out = cbs(folded["w4"], folded["b4"], cat)
    c_out = out.shape[1]
    return out.reshape(n, c_out, hh, ww).astype(out_dtype)


if __name__ == "__main__":
    # Shapes consistent with the module: N=2, c_in=4, H=W=16,
    # c_hid1=8, c_hid2=8, c_out=8, block=Conv (1x1), nblocks=1.
    N, C_IN, H, W = 2, 4, 16, 16
    C_HID1, C_HID2, C_OUT = 8, 8, 8

    key = jax.random.PRNGKey(0)
    key, kx = jax.random.split(key)
    x = jax.random.normal(kx, (N, C_IN, H, W), jnp.float32)

    folded = make_params(key, C_IN, C_OUT, C_HID1, C_HID2)
    kparams = prepare_kernel_params(folded, c_hid1=C_HID1, c_hid2=C_HID2)

    out = gelan_block(x, kparams, tm=512)
    out = jax.block_until_ready(out)

    ref = ref_forward(x, folded, c_hid1=C_HID1)
    assert out.shape == (N, C_OUT, H, W), out.shape
    max_err = float(jnp.max(jnp.abs(out.astype(jnp.float32)
                                    - ref.astype(jnp.float32))))
    assert max_err < 5e-2, max_err

    print("KERNEL_OK")
</pallas_src>

<mosaic_0001>
module attributes {stable_mosaic.version = 11 : i64} {
  func.func @kernel(%arg0: i32, %arg1: i32, %arg2: memref<1x4x256xbf16, #tpu.memory_space<vmem>>, %arg3: memref<4x4xf32, #tpu.memory_space<vmem>>, %arg4: memref<4x1xf32, #tpu.memory_space<vmem>>, %arg5: memref<4x4xf32, #tpu.memory_space<vmem>>, %arg6: memref<4x1xf32, #tpu.memory_space<vmem>>, %arg7: memref<8x4xf32, #tpu.memory_space<vmem>>, %arg8: memref<8x1xf32, #tpu.memory_space<vmem>>, %arg9: memref<8x8xf32, #tpu.memory_space<vmem>>, %arg10: memref<8x1xf32, #tpu.memory_space<vmem>>, %arg11: memref<8x4xf32, #tpu.memory_space<vmem>>, %arg12: memref<8x4xf32, #tpu.memory_space<vmem>>, %arg13: memref<8x8xf32, #tpu.memory_space<vmem>>, %arg14: memref<8x8xf32, #tpu.memory_space<vmem>>, %arg15: memref<8x1xf32, #tpu.memory_space<vmem>>, %arg16: memref<1x8x256xbf16, #tpu.memory_space<vmem>>) attributes {dimension_semantics = [#tpu.dimension_semantics<parallel>, #tpu.dimension_semantics<parallel>], iteration_bounds = array<i64: 2, 1>, scalar_prefetch = 0 : i64, scratch_operands = 0 : i64, tpu.core_type = #tpu.core_type<tc>, window_params = [{transform_indices = @transform_0, window_bounds = array<i64: 1, 4, 256>}, {pipeline_mode = #tpu.pipeline_mode<synchronous>, transform_indices = @transform_1, window_bounds = array<i64: 4, 4>}, {pipeline_mode = #tpu.pipeline_mode<synchronous>, transform_indices = @transform_2, window_bounds = array<i64: 4, 1>}, {pipeline_mode = #tpu.pipeline_mode<synchronous>, transform_indices = @transform_3, window_bounds = array<i64: 4, 4>}, {pipeline_mode = #tpu.pipeline_mode<synchronous>, transform_indices = @transform_4, window_bounds = array<i64: 4, 1>}, {pipeline_mode = #tpu.pipeline_mode<synchronous>, transform_indices = @transform_5, window_bounds = array<i64: 8, 4>}, {pipeline_mode = #tpu.pipeline_mode<synchronous>, transform_indices = @transform_6, window_bounds = array<i64: 8, 1>}, {pipeline_mode = #tpu.pipeline_mode<synchronous>, transform_indices = @transform_7, window_bounds = array<i64: 8, 8>}, {pipeline_mode = #tpu.pipeline_mode<synchronous>, transform_indices = @transform_8, window_bounds = array<i64: 8, 1>}, {pipeline_mode = #tpu.pipeline_mode<synchronous>, transform_indices = @transform_9, window_bounds = array<i64: 8, 4>}, {pipeline_mode = #tpu.pipeline_mode<synchronous>, transform_indices = @transform_10, window_bounds = array<i64: 8, 4>}, {pipeline_mode = #tpu.pipeline_mode<synchronous>, transform_indices = @transform_11, window_bounds = array<i64: 8, 8>}, {pipeline_mode = #tpu.pipeline_mode<synchronous>, transform_indices = @transform_12, window_bounds = array<i64: 8, 8>}, {pipeline_mode = #tpu.pipeline_mode<synchronous>, transform_indices = @transform_13, window_bounds = array<i64: 8, 1>}, {transform_indices = @transform_14, window_bounds = array<i64: 1, 8, 256>}]} {
    %c0 = arith.constant 0 : index
    %c0_0 = arith.constant 0 : index
    %c0_1 = arith.constant 0 : index
    %0 = vector.load %arg2[%c0, %c0_0, %c0_1] : memref<1x4x256xbf16, #tpu.memory_space<vmem>>, vector<1x4x256xbf16>
    %1 = vector.shape_cast %0 : vector<1x4x256xbf16> to vector<4x256xbf16>
    %2 = arith.extf %1 : vector<4x256xbf16> to vector<4x256xf32>
    %c0_2 = arith.constant 0 : index
    %c0_3 = arith.constant 0 : index
    %3 = vector.load %arg4[%c0_2, %c0_3] : memref<4x1xf32, #tpu.memory_space<vmem>>, vector<4x1xf32>
    %4 = vector.shape_cast %3 : vector<4x1xf32> to vector<4x1xf32>
    %5 = vector.broadcast %4 : vector<4x1xf32> to vector<4x256xf32>
    %c0_4 = arith.constant 0 : index
    %c0_5 = arith.constant 0 : index
    %6 = vector.load %arg3[%c0_4, %c0_5] : memref<4x4xf32, #tpu.memory_space<vmem>>, vector<4x4xf32>
    %7 = vector.extract_strided_slice %6 {offsets = [0, 0], sizes = [4, 1], strides = [1, 1]} : vector<4x4xf32> to vector<4x1xf32>
    %8 = vector.extract_strided_slice %2 {offsets = [0, 0], sizes = [1, 256], strides = [1, 1]} : vector<4x256xf32> to vector<1x256xf32>
    %9 = vector.broadcast %7 : vector<4x1xf32> to vector<4x256xf32>
    %10 = vector.broadcast %8 : vector<1x256xf32> to vector<4x256xf32>
    %11 = arith.mulf %9, %10 : vector<4x256xf32>
    %12 = arith.addf %5, %11 : vector<4x256xf32>
    %13 = vector.extract_strided_slice %6 {offsets = [0, 1], sizes = [4, 1], strides = [1, 1]} : vector<4x4xf32> to vector<4x1xf32>
    %14 = vector.extract_strided_slice %2 {offsets = [1, 0], sizes = [1, 256], strides = [1, 1]} : vector<4x256xf32> to vector<1x256xf32>
    %15 = vector.broadcast %13 : vector<4x1xf32> to vector<4x256xf32>
    %16 = vector.broadcast %14 : vector<1x256xf32> to vector<4x256xf32>
    %17 = arith.mulf %15, %16 : vector<4x256xf32>
    %18 = arith.addf %12, %17 : vector<4x256xf32>
    %19 = vector.extract_strided_slice %6 {offsets = [0, 2], sizes = [4, 1], strides = [1, 1]} : vector<4x4xf32> to vector<4x1xf32>
    %20 = vector.extract_strided_slice %2 {offsets = [2, 0], sizes = [1, 256], strides = [1, 1]} : vector<4x256xf32> to vector<1x256xf32>
    %21 = vector.broadcast %19 : vector<4x1xf32> to vector<4x256xf32>
    %22 = vector.broadcast %20 : vector<1x256xf32> to vector<4x256xf32>
    %23 = arith.mulf %21, %22 : vector<4x256xf32>
    %24 = arith.addf %18, %23 : vector<4x256xf32>
    %25 = vector.extract_strided_slice %6 {offsets = [0, 3], sizes = [4, 1], strides = [1, 1]} : vector<4x4xf32> to vector<4x1xf32>
    %26 = vector.extract_strided_slice %2 {offsets = [3, 0], sizes = [1, 256], strides = [1, 1]} : vector<4x256xf32> to vector<1x256xf32>
    %27 = vector.broadcast %25 : vector<4x1xf32> to vector<4x256xf32>
    %28 = vector.broadcast %26 : vector<1x256xf32> to vector<4x256xf32>
    %29 = arith.mulf %27, %28 : vector<4x256xf32>
    %30 = arith.addf %24, %29 : vector<4x256xf32>
    %31 = arith.negf %30 : vector<4x256xf32>
    %32 = math.exp %31 : vector<4x256xf32>
    %cst = arith.constant 1.000000e+00 : f32
    %33 = vector.broadcast %cst : f32 to vector<4x256xf32>
    %34 = arith.addf %33, %32 : vector<4x256xf32>
    %35 = arith.divf %33, %34 : vector<4x256xf32>
    %36 = arith.mulf %30, %35 : vector<4x256xf32>
    %c0_6 = arith.constant 0 : index
    %c0_7 = arith.constant 0 : index
    %37 = vector.load %arg6[%c0_6, %c0_7] : memref<4x1xf32, #tpu.memory_space<vmem>>, vector<4x1xf32>
    %38 = vector.shape_cast %37 : vector<4x1xf32> to vector<4x1xf32>
    %39 = vector.broadcast %38 : vector<4x1xf32> to vector<4x256xf32>
    %c0_8 = arith.constant 0 : index
    %c0_9 = arith.constant 0 : index
    %40 = vector.load %arg5[%c0_8, %c0_9] : memref<4x4xf32, #tpu.memory_space<vmem>>, vector<4x4xf32>
    %41 = vector.extract_strided_slice %40 {offsets = [0, 0], sizes = [4, 1], strides = [1, 1]} : vector<4x4xf32> to vector<4x1xf32>
    %42 = vector.extract_strided_slice %2 {offsets = [0, 0], sizes = [1, 256], strides = [1, 1]} : vector<4x256xf32> to vector<1x256xf32>
    %43 = vector.broadcast %41 : vector<4x1xf32> to vector<4x256xf32>
    %44 = vector.broadcast %42 : vector<1x256xf32> to vector<4x256xf32>
    %45 = arith.mulf %43, %44 : vector<4x256xf32>
    %46 = arith.addf %39, %45 : vector<4x256xf32>
    %47 = vector.extract_strided_slice %40 {offsets = [0, 1], sizes = [4, 1], strides = [1, 1]} : vector<4x4xf32> to vector<4x1xf32>
    %48 = vector.extract_strided_slice %2 {offsets = [1, 0], sizes = [1, 256], strides = [1, 1]} : vector<4x256xf32> to vector<1x256xf32>
    %49 = vector.broadcast %47 : vector<4x1xf32> to vector<4x256xf32>
    %50 = vector.broadcast %48 : vector<1x256xf32> to vector<4x256xf32>
    %51 = arith.mulf %49, %50 : vector<4x256xf32>
    %52 = arith.addf %46, %51 : vector<4x256xf32>
    %53 = vector.extract_strided_slice %40 {offsets = [0, 2], sizes = [4, 1], strides = [1, 1]} : vector<4x4xf32> to vector<4x1xf32>
    %54 = vector.extract_strided_slice %2 {offsets = [2, 0], sizes = [1, 256], strides = [1, 1]} : vector<4x256xf32> to vector<1x256xf32>
    %55 = vector.broadcast %53 : vector<4x1xf32> to vector<4x256xf32>
    %56 = vector.broadcast %54 : vector<1x256xf32> to vector<4x256xf32>
    %57 = arith.mulf %55, %56 : vector<4x256xf32>
    %58 = arith.addf %52, %57 : vector<4x256xf32>
    %59 = vector.extract_strided_slice %40 {offsets = [0, 3], sizes = [4, 1], strides = [1, 1]} : vector<4x4xf32> to vector<4x1xf32>
    %60 = vector.extract_strided_slice %2 {offsets = [3, 0], sizes = [1, 256], strides = [1, 1]} : vector<4x256xf32> to vector<1x256xf32>
    %61 = vector.broadcast %59 : vector<4x1xf32> to vector<4x256xf32>
    %62 = vector.broadcast %60 : vector<1x256xf32> to vector<4x256xf32>
    %63 = arith.mulf %61, %62 : vector<4x256xf32>
    %64 = arith.addf %58, %63 : vector<4x256xf32>
    %65 = arith.negf %64 : vector<4x256xf32>
    %66 = math.exp %65 : vector<4x256xf32>
    %cst_10 = arith.constant 1.000000e+00 : f32
    %67 = vector.broadcast %cst_10 : f32 to vector<4x256xf32>
    %68 = arith.addf %67, %66 : vector<4x256xf32>
    %69 = arith.divf %67, %68 : vector<4x256xf32>
    %70 = arith.mulf %64, %69 : vector<4x256xf32>
    %71 = arith.truncf %70 : vector<4x256xf32> to vector<4x256xbf16>
    %72 = arith.extf %71 : vector<4x256xbf16> to vector<4x256xf32>
    %c0_11 = arith.constant 0 : index
    %c0_12 = arith.constant 0 : index
    %73 = vector.load %arg8[%c0_11, %c0_12] : memref<8x1xf32, #tpu.memory_space<vmem>>, vector<8x1xf32>
    %74 = vector.shape_cast %73 : vector<8x1xf32> to vector<8x1xf32>
    %75 = vector.broadcast %74 : vector<8x1xf32> to vector<8x256xf32>
    %c0_13 = arith.constant 0 : index
    %c0_14 = arith.constant 0 : index
    %76 = vector.load %arg7[%c0_13, %c0_14] : memref<8x4xf32, #tpu.memory_space<vmem>>, vector<8x4xf32>
    %77 = vector.extract_strided_slice %76 {offsets = [0, 0], sizes = [8, 1], strides = [1, 1]} : vector<8x4xf32> to vector<8x1xf32>
    %78 = vector.extract_strided_slice %72 {offsets = [0, 0], sizes = [1, 256], strides = [1, 1]} : vector<4x256xf32> to vector<1x256xf32>
    %79 = vector.broadcast %77 : vector<8x1xf32> to vector<8x256xf32>
    %80 = vector.broadcast %78 : vector<1x256xf32> to vector<8x256xf32>
    %81 = arith.mulf %79, %80 : vector<8x256xf32>
    %82 = arith.addf %75, %81 : vector<8x256xf32>
    %83 = vector.extract_strided_slice %76 {offsets = [0, 1], sizes = [8, 1], strides = [1, 1]} : vector<8x4xf32> to vector<8x1xf32>
    %84 = vector.extract_strided_slice %72 {offsets = [1, 0], sizes = [1, 256], strides = [1, 1]} : vector<4x256xf32> to vector<1x256xf32>
    %85 = vector.broadcast %83 : vector<8x1xf32> to vector<8x256xf32>
    %86 = vector.broadcast %84 : vector<1x256xf32> to vector<8x256xf32>
    %87 = arith.mulf %85, %86 : vector<8x256xf32>
    %88 = arith.addf %82, %87 : vector<8x256xf32>
    %89 = vector.extract_strided_slice %76 {offsets = [0, 2], sizes = [8, 1], strides = [1, 1]} : vector<8x4xf32> to vector<8x1xf32>
    %90 = vector.extract_strided_slice %72 {offsets = [2, 0], sizes = [1, 256], strides = [1, 1]} : vector<4x256xf32> to vector<1x256xf32>
    %91 = vector.broadcast %89 : vector<8x1xf32> to vector<8x256xf32>
    %92 = vector.broadcast %90 : vector<1x256xf32> to vector<8x256xf32>
    %93 = arith.mulf %91, %92 : vector<8x256xf32>
    %94 = arith.addf %88, %93 : vector<8x256xf32>
    %95 = vector.extract_strided_slice %76 {offsets = [0, 3], sizes = [8, 1], strides = [1, 1]} : vector<8x4xf32> to vector<8x1xf32>
    %96 = vector.extract_strided_slice %72 {offsets = [3, 0], sizes = [1, 256], strides = [1, 1]} : vector<4x256xf32> to vector<1x256xf32>
    %97 = vector.broadcast %95 : vector<8x1xf32> to vector<8x256xf32>
    %98 = vector.broadcast %96 : vector<1x256xf32> to vector<8x256xf32>
    %99 = arith.mulf %97, %98 : vector<8x256xf32>
    %100 = arith.addf %94, %99 : vector<8x256xf32>
    %101 = arith.negf %100 : vector<8x256xf32>
    %102 = math.exp %101 : vector<8x256xf32>
    %cst_15 = arith.constant 1.000000e+00 : f32
    %103 = vector.broadcast %cst_15 : f32 to vector<8x256xf32>
    %104 = arith.addf %103, %102 : vector<8x256xf32>
    %105 = arith.divf %103, %104 : vector<8x256xf32>
    %106 = arith.mulf %100, %105 : vector<8x256xf32>
    %107 = arith.truncf %106 : vector<8x256xf32> to vector<8x256xbf16>
    %108 = arith.extf %107 : vector<8x256xbf16> to vector<8x256xf32>
    %c0_16 = arith.constant 0 : index
    %c0_17 = arith.constant 0 : index
    %109 = vector.load %arg10[%c0_16, %c0_17] : memref<8x1xf32, #tpu.memory_space<vmem>>, vector<8x1xf32>
    %110 = vector.shape_cast %109 : vector<8x1xf32> to vector<8x1xf32>
    %111 = vector.broadcast %110 : vector<8x1xf32> to vector<8x256xf32>
    %c0_18 = arith.constant 0 : index
    %c0_19 = arith.constant 0 : index
    %112 = vector.load %arg9[%c0_18, %c0_19] : memref<8x8xf32, #tpu.memory_space<vmem>>, vector<8x8xf32>
    %113 = vector.extract_strided_slice %112 {offsets = [0, 0], sizes = [8, 1], strides = [1, 1]} : vector<8x8xf32> to vector<8x1xf32>
    %114 = vector.extract_strided_slice %108 {offsets = [0, 0], sizes = [1, 256], strides = [1, 1]} : vector<8x256xf32> to vector<1x256xf32>
    %115 = vector.broadcast %113 : vector<8x1xf32> to vector<8x256xf32>
    %116 = vector.broadcast %114 : vector<1x256xf32> to vector<8x256xf32>
    %117 = arith.mulf %115, %116 : vector<8x256xf32>
    %118 = arith.addf %111, %117 : vector<8x256xf32>
    %119 = vector.extract_strided_slice %112 {offsets = [0, 1], sizes = [8, 1], strides = [1, 1]} : vector<8x8xf32> to vector<8x1xf32>
    %120 = vector.extract_strided_slice %108 {offsets = [1, 0], sizes = [1, 256], strides = [1, 1]} : vector<8x256xf32> to vector<1x256xf32>
    %121 = vector.broadcast %119 : vector<8x1xf32> to vector<8x256xf32>
    %122 = vector.broadcast %120 : vector<1x256xf32> to vector<8x256xf32>
    %123 = arith.mulf %121, %122 : vector<8x256xf32>
    %124 = arith.addf %118, %123 : vector<8x256xf32>
    %125 = vector.extract_strided_slice %112 {offsets = [0, 2], sizes = [8, 1], strides = [1, 1]} : vector<8x8xf32> to vector<8x1xf32>
    %126 = vector.extract_strided_slice %108 {offsets = [2, 0], sizes = [1, 256], strides = [1, 1]} : vector<8x256xf32> to vector<1x256xf32>
    %127 = vector.broadcast %125 : vector<8x1xf32> to vector<8x256xf32>
    %128 = vector.broadcast %126 : vector<1x256xf32> to vector<8x256xf32>
    %129 = arith.mulf %127, %128 : vector<8x256xf32>
    %130 = arith.addf %124, %129 : vector<8x256xf32>
    %131 = vector.extract_strided_slice %112 {offsets = [0, 3], sizes = [8, 1], strides = [1, 1]} : vector<8x8xf32> to vector<8x1xf32>
    %132 = vector.extract_strided_slice %108 {offsets = [3, 0], sizes = [1, 256], strides = [1, 1]} : vector<8x256xf32> to vector<1x256xf32>
    %133 = vector.broadcast %131 : vector<8x1xf32> to vector<8x256xf32>
    %134 = vector.broadcast %132 : vector<1x256xf32> to vector<8x256xf32>
    %135 = arith.mulf %133, %134 : vector<8x256xf32>
    %136 = arith.addf %130, %135 : vector<8x256xf32>
    %137 = vector.extract_strided_slice %112 {offsets = [0, 4], sizes = [8, 1], strides = [1, 1]} : vector<8x8xf32> to vector<8x1xf32>
    %138 = vector.extract_strided_slice %108 {offsets = [4, 0], sizes = [1, 256], strides = [1, 1]} : vector<8x256xf32> to vector<1x256xf32>
    %139 = vector.broadcast %137 : vector<8x1xf32> to vector<8x256xf32>
    %140 = vector.broadcast %138 : vector<1x256xf32> to vector<8x256xf32>
    %141 = arith.mulf %139, %140 : vector<8x256xf32>
    %142 = arith.addf %136, %141 : vector<8x256xf32>
    %143 = vector.extract_strided_slice %112 {offsets = [0, 5], sizes = [8, 1], strides = [1, 1]} : vector<8x8xf32> to vector<8x1xf32>
    %144 = vector.extract_strided_slice %108 {offsets = [5, 0], sizes = [1, 256], strides = [1, 1]} : vector<8x256xf32> to vector<1x256xf32>
    %145 = vector.broadcast %143 : vector<8x1xf32> to vector<8x256xf32>
    %146 = vector.broadcast %144 : vector<1x256xf32> to vector<8x256xf32>
    %147 = arith.mulf %145, %146 : vector<8x256xf32>
    %148 = arith.addf %142, %147 : vector<8x256xf32>
    %149 = vector.extract_strided_slice %112 {offsets = [0, 6], sizes = [8, 1], strides = [1, 1]} : vector<8x8xf32> to vector<8x1xf32>
    %150 = vector.extract_strided_slice %108 {offsets = [6, 0], sizes = [1, 256], strides = [1, 1]} : vector<8x256xf32> to vector<1x256xf32>
    %151 = vector.broadcast %149 : vector<8x1xf32> to vector<8x256xf32>
    %152 = vector.broadcast %150 : vector<1x256xf32> to vector<8x256xf32>
    %153 = arith.mulf %151, %152 : vector<8x256xf32>
    %154 = arith.addf %148, %153 : vector<8x256xf32>
    %155 = vector.extract_strided_slice %112 {offsets = [0, 7], sizes = [8, 1], strides = [1, 1]} : vector<8x8xf32> to vector<8x1xf32>
    %156 = vector.extract_strided_slice %108 {offsets = [7, 0], sizes = [1, 256], strides = [1, 1]} : vector<8x256xf32> to vector<1x256xf32>
    %157 = vector.broadcast %155 : vector<8x1xf32> to vector<8x256xf32>
    %158 = vector.broadcast %156 : vector<1x256xf32> to vector<8x256xf32>
    %159 = arith.mulf %157, %158 : vector<8x256xf32>
    %160 = arith.addf %154, %159 : vector<8x256xf32>
    %161 = arith.negf %160 : vector<8x256xf32>
    %162 = math.exp %161 : vector<8x256xf32>
    %cst_20 = arith.constant 1.000000e+00 : f32
    %163 = vector.broadcast %cst_20 : f32 to vector<8x256xf32>
    %164 = arith.addf %163, %162 : vector<8x256xf32>
    %165 = arith.divf %163, %164 : vector<8x256xf32>
    %166 = arith.mulf %160, %165 : vector<8x256xf32>
    %c0_21 = arith.constant 0 : index
    %c0_22 = arith.constant 0 : index
    %167 = vector.load %arg15[%c0_21, %c0_22] : memref<8x1xf32, #tpu.memory_space<vmem>>, vector<8x1xf32>
    %168 = vector.shape_cast %167 : vector<8x1xf32> to vector<8x1xf32>
    %169 = vector.broadcast %168 : vector<8x1xf32> to vector<8x256xf32>
    %170 = arith.truncf %36 : vector<4x256xf32> to vector<4x256xbf16>
    %171 = arith.extf %170 : vector<4x256xbf16> to vector<4x256xf32>
    %c0_23 = arith.constant 0 : index
    %c0_24 = arith.constant 0 : index
    %172 = vector.load %arg11[%c0_23, %c0_24] : memref<8x4xf32, #tpu.memory_space<vmem>>, vector<8x4xf32>
    %173 = vector.extract_strided_slice %172 {offsets = [0, 0], sizes = [8, 1], strides = [1, 1]} : vector<8x4xf32> to vector<8x1xf32>
    %174 = vector.extract_strided_slice %171 {offsets = [0, 0], sizes = [1, 256], strides = [1, 1]} : vector<4x256xf32> to vector<1x256xf32>
    %175 = vector.broadcast %173 : vector<8x1xf32> to vector<8x256xf32>
    %176 = vector.broadcast %174 : vector<1x256xf32> to vector<8x256xf32>
    %177 = arith.mulf %175, %176 : vector<8x256xf32>
    %178 = arith.addf %169, %177 : vector<8x256xf32>
    %179 = vector.extract_strided_slice %172 {offsets = [0, 1], sizes = [8, 1], strides = [1, 1]} : vector<8x4xf32> to vector<8x1xf32>
    %180 = vector.extract_strided_slice %171 {offsets = [1, 0], sizes = [1, 256], strides = [1, 1]} : vector<4x256xf32> to vector<1x256xf32>
    %181 = vector.broadcast %179 : vector<8x1xf32> to vector<8x256xf32>
    %182 = vector.broadcast %180 : vector<1x256xf32> to vector<8x256xf32>
    %183 = arith.mulf %181, %182 : vector<8x256xf32>
    %184 = arith.addf %178, %183 : vector<8x256xf32>
    %185 = vector.extract_strided_slice %172 {offsets = [0, 2], sizes = [8, 1], strides = [1, 1]} : vector<8x4xf32> to vector<8x1xf32>
    %186 = vector.extract_strided_slice %171 {offsets = [2, 0], sizes = [1, 256], strides = [1, 1]} : vector<4x256xf32> to vector<1x256xf32>
    %187 = vector.broadcast %185 : vector<8x1xf32> to vector<8x256xf32>
    %188 = vector.broadcast %186 : vector<1x256xf32> to vector<8x256xf32>
    %189 = arith.mulf %187, %188 : vector<8x256xf32>
    %190 = arith.addf %184, %189 : vector<8x256xf32>
    %191 = vector.extract_strided_slice %172 {offsets = [0, 3], sizes = [8, 1], strides = [1, 1]} : vector<8x4xf32> to vector<8x1xf32>
    %192 = vector.extract_strided_slice %171 {offsets = [3, 0], sizes = [1, 256], strides = [1, 1]} : vector<4x256xf32> to vector<1x256xf32>
    %193 = vector.broadcast %191 : vector<8x1xf32> to vector<8x256xf32>
    %194 = vector.broadcast %192 : vector<1x256xf32> to vector<8x256xf32>
    %195 = arith.mulf %193, %194 : vector<8x256xf32>
    %196 = arith.addf %190, %195 : vector<8x256xf32>
    %c0_25 = arith.constant 0 : index
    %c0_26 = arith.constant 0 : index
    %197 = vector.load %arg12[%c0_25, %c0_26] : memref<8x4xf32, #tpu.memory_space<vmem>>, vector<8x4xf32>
    %198 = vector.extract_strided_slice %197 {offsets = [0, 0], sizes = [8, 1], strides = [1, 1]} : vector<8x4xf32> to vector<8x1xf32>
    %199 = vector.extract_strided_slice %72 {offsets = [0, 0], sizes = [1, 256], strides = [1, 1]} : vector<4x256xf32> to vector<1x256xf32>
    %200 = vector.broadcast %198 : vector<8x1xf32> to vector<8x256xf32>
    %201 = vector.broadcast %199 : vector<1x256xf32> to vector<8x256xf32>
    %202 = arith.mulf %200, %201 : vector<8x256xf32>
    %203 = arith.addf %196, %202 : vector<8x256xf32>
    %204 = vector.extract_strided_slice %197 {offsets = [0, 1], sizes = [8, 1], strides = [1, 1]} : vector<8x4xf32> to vector<8x1xf32>
    %205 = vector.extract_strided_slice %72 {offsets = [1, 0], sizes = [1, 256], strides = [1, 1]} : vector<4x256xf32> to vector<1x256xf32>
    %206 = vector.broadcast %204 : vector<8x1xf32> to vector<8x256xf32>
    %207 = vector.broadcast %205 : vector<1x256xf32> to vector<8x256xf32>
    %208 = arith.mulf %206, %207 : vector<8x256xf32>
    %209 = arith.addf %203, %208 : vector<8x256xf32>
    %210 = vector.extract_strided_slice %197 {offsets = [0, 2], sizes = [8, 1], strides = [1, 1]} : vector<8x4xf32> to vector<8x1xf32>
    %211 = vector.extract_strided_slice %72 {offsets = [2, 0], sizes = [1, 256], strides = [1, 1]} : vector<4x256xf32> to vector<1x256xf32>
    %212 = vector.broadcast %210 : vector<8x1xf32> to vector<8x256xf32>
    %213 = vector.broadcast %211 : vector<1x256xf32> to vector<8x256xf32>
    %214 = arith.mulf %212, %213 : vector<8x256xf32>
    %215 = arith.addf %209, %214 : vector<8x256xf32>
    %216 = vector.extract_strided_slice %197 {offsets = [0, 3], sizes = [8, 1], strides = [1, 1]} : vector<8x4xf32> to vector<8x1xf32>
    %217 = vector.extract_strided_slice %72 {offsets = [3, 0], sizes = [1, 256], strides = [1, 1]} : vector<4x256xf32> to vector<1x256xf32>
    %218 = vector.broadcast %216 : vector<8x1xf32> to vector<8x256xf32>
    %219 = vector.broadcast %217 : vector<1x256xf32> to vector<8x256xf32>
    %220 = arith.mulf %218, %219 : vector<8x256xf32>
    %221 = arith.addf %215, %220 : vector<8x256xf32>
    %c0_27 = arith.constant 0 : index
    %c0_28 = arith.constant 0 : index
    %222 = vector.load %arg13[%c0_27, %c0_28] : memref<8x8xf32, #tpu.memory_space<vmem>>, vector<8x8xf32>
    %223 = vector.extract_strided_slice %222 {offsets = [0, 0], sizes = [8, 1], strides = [1, 1]} : vector<8x8xf32> to vector<8x1xf32>
    %224 = vector.extract_strided_slice %108 {offsets = [0, 0], sizes = [1, 256], strides = [1, 1]} : vector<8x256xf32> to vector<1x256xf32>
    %225 = vector.broadcast %223 : vector<8x1xf32> to vector<8x256xf32>
    %226 = vector.broadcast %224 : vector<1x256xf32> to vector<8x256xf32>
    %227 = arith.mulf %225, %226 : vector<8x256xf32>
    %228 = arith.addf %221, %227 : vector<8x256xf32>
    %229 = vector.extract_strided_slice %222 {offsets = [0, 1], sizes = [8, 1], strides = [1, 1]} : vector<8x8xf32> to vector<8x1xf32>
    %230 = vector.extract_strided_slice %108 {offsets = [1, 0], sizes = [1, 256], strides = [1, 1]} : vector<8x256xf32> to vector<1x256xf32>
    %231 = vector.broadcast %229 : vector<8x1xf32> to vector<8x256xf32>
    %232 = vector.broadcast %230 : vector<1x256xf32> to vector<8x256xf32>
    %233 = arith.mulf %231, %232 : vector<8x256xf32>
    %234 = arith.addf %228, %233 : vector<8x256xf32>
    %235 = vector.extract_strided_slice %222 {offsets = [0, 2], sizes = [8, 1], strides = [1, 1]} : vector<8x8xf32> to vector<8x1xf32>
    %236 = vector.extract_strided_slice %108 {offsets = [2, 0], sizes = [1, 256], strides = [1, 1]} : vector<8x256xf32> to vector<1x256xf32>
    %237 = vector.broadcast %235 : vector<8x1xf32> to vector<8x256xf32>
    %238 = vector.broadcast %236 : vector<1x256xf32> to vector<8x256xf32>
    %239 = arith.mulf %237, %238 : vector<8x256xf32>
    %240 = arith.addf %234, %239 : vector<8x256xf32>
    %241 = vector.extract_strided_slice %222 {offsets = [0, 3], sizes = [8, 1], strides = [1, 1]} : vector<8x8xf32> to vector<8x1xf32>
    %242 = vector.extract_strided_slice %108 {offsets = [3, 0], sizes = [1, 256], strides = [1, 1]} : vector<8x256xf32> to vector<1x256xf32>
    %243 = vector.broadcast %241 : vector<8x1xf32> to vector<8x256xf32>
    %244 = vector.broadcast %242 : vector<1x256xf32> to vector<8x256xf32>
    %245 = arith.mulf %243, %244 : vector<8x256xf32>
    %246 = arith.addf %240, %245 : vector<8x256xf32>
    %247 = vector.extract_strided_slice %222 {offsets = [0, 4], sizes = [8, 1], strides = [1, 1]} : vector<8x8xf32> to vector<8x1xf32>
    %248 = vector.extract_strided_slice %108 {offsets = [4, 0], sizes = [1, 256], strides = [1, 1]} : vector<8x256xf32> to vector<1x256xf32>
    %249 = vector.broadcast %247 : vector<8x1xf32> to vector<8x256xf32>
    %250 = vector.broadcast %248 : vector<1x256xf32> to vector<8x256xf32>
    %251 = arith.mulf %249, %250 : vector<8x256xf32>
    %252 = arith.addf %246, %251 : vector<8x256xf32>
    %253 = vector.extract_strided_slice %222 {offsets = [0, 5], sizes = [8, 1], strides = [1, 1]} : vector<8x8xf32> to vector<8x1xf32>
    %254 = vector.extract_strided_slice %108 {offsets = [5, 0], sizes = [1, 256], strides = [1, 1]} : vector<8x256xf32> to vector<1x256xf32>
    %255 = vector.broadcast %253 : vector<8x1xf32> to vector<8x256xf32>
    %256 = vector.broadcast %254 : vector<1x256xf32> to vector<8x256xf32>
    %257 = arith.mulf %255, %256 : vector<8x256xf32>
    %258 = arith.addf %252, %257 : vector<8x256xf32>
    %259 = vector.extract_strided_slice %222 {offsets = [0, 6], sizes = [8, 1], strides = [1, 1]} : vector<8x8xf32> to vector<8x1xf32>
    %260 = vector.extract_strided_slice %108 {offsets = [6, 0], sizes = [1, 256], strides = [1, 1]} : vector<8x256xf32> to vector<1x256xf32>
    %261 = vector.broadcast %259 : vector<8x1xf32> to vector<8x256xf32>
    %262 = vector.broadcast %260 : vector<1x256xf32> to vector<8x256xf32>
    %263 = arith.mulf %261, %262 : vector<8x256xf32>
    %264 = arith.addf %258, %263 : vector<8x256xf32>
    %265 = vector.extract_strided_slice %222 {offsets = [0, 7], sizes = [8, 1], strides = [1, 1]} : vector<8x8xf32> to vector<8x1xf32>
    %266 = vector.extract_strided_slice %108 {offsets = [7, 0], sizes = [1, 256], strides = [1, 1]} : vector<8x256xf32> to vector<1x256xf32>
    %267 = vector.broadcast %265 : vector<8x1xf32> to vector<8x256xf32>
    %268 = vector.broadcast %266 : vector<1x256xf32> to vector<8x256xf32>
    %269 = arith.mulf %267, %268 : vector<8x256xf32>
    %270 = arith.addf %264, %269 : vector<8x256xf32>
    %271 = arith.truncf %166 : vector<8x256xf32> to vector<8x256xbf16>
    %272 = arith.extf %271 : vector<8x256xbf16> to vector<8x256xf32>
    %c0_29 = arith.constant 0 : index
    %c0_30 = arith.constant 0 : index
    %273 = vector.load %arg14[%c0_29, %c0_30] : memref<8x8xf32, #tpu.memory_space<vmem>>, vector<8x8xf32>
    %274 = vector.extract_strided_slice %273 {offsets = [0, 0], sizes = [8, 1], strides = [1, 1]} : vector<8x8xf32> to vector<8x1xf32>
    %275 = vector.extract_strided_slice %272 {offsets = [0, 0], sizes = [1, 256], strides = [1, 1]} : vector<8x256xf32> to vector<1x256xf32>
    %276 = vector.broadcast %274 : vector<8x1xf32> to vector<8x256xf32>
    %277 = vector.broadcast %275 : vector<1x256xf32> to vector<8x256xf32>
    %278 = arith.mulf %276, %277 : vector<8x256xf32>
    %279 = arith.addf %270, %278 : vector<8x256xf32>
    %280 = vector.extract_strided_slice %273 {offsets = [0, 1], sizes = [8, 1], strides = [1, 1]} : vector<8x8xf32> to vector<8x1xf32>
    %281 = vector.extract_strided_slice %272 {offsets = [1, 0], sizes = [1, 256], strides = [1, 1]} : vector<8x256xf32> to vector<1x256xf32>
    %282 = vector.broadcast %280 : vector<8x1xf32> to vector<8x256xf32>
    %283 = vector.broadcast %281 : vector<1x256xf32> to vector<8x256xf32>
    %284 = arith.mulf %282, %283 : vector<8x256xf32>
    %285 = arith.addf %279, %284 : vector<8x256xf32>
    %286 = vector.extract_strided_slice %273 {offsets = [0, 2], sizes = [8, 1], strides = [1, 1]} : vector<8x8xf32> to vector<8x1xf32>
    %287 = vector.extract_strided_slice %272 {offsets = [2, 0], sizes = [1, 256], strides = [1, 1]} : vector<8x256xf32> to vector<1x256xf32>
    %288 = vector.broadcast %286 : vector<8x1xf32> to vector<8x256xf32>
    %289 = vector.broadcast %287 : vector<1x256xf32> to vector<8x256xf32>
    %290 = arith.mulf %288, %289 : vector<8x256xf32>
    %291 = arith.addf %285, %290 : vector<8x256xf32>
    %292 = vector.extract_strided_slice %273 {offsets = [0, 3], sizes = [8, 1], strides = [1, 1]} : vector<8x8xf32> to vector<8x1xf32>
    %293 = vector.extract_strided_slice %272 {offsets = [3, 0], sizes = [1, 256], strides = [1, 1]} : vector<8x256xf32> to vector<1x256xf32>
    %294 = vector.broadcast %292 : vector<8x1xf32> to vector<8x256xf32>
    %295 = vector.broadcast %293 : vector<1x256xf32> to vector<8x256xf32>
    %296 = arith.mulf %294, %295 : vector<8x256xf32>
    %297 = arith.addf %291, %296 : vector<8x256xf32>
    %298 = vector.extract_strided_slice %273 {offsets = [0, 4], sizes = [8, 1], strides = [1, 1]} : vector<8x8xf32> to vector<8x1xf32>
    %299 = vector.extract_strided_slice %272 {offsets = [4, 0], sizes = [1, 256], strides = [1, 1]} : vector<8x256xf32> to vector<1x256xf32>
    %300 = vector.broadcast %298 : vector<8x1xf32> to vector<8x256xf32>
    %301 = vector.broadcast %299 : vector<1x256xf32> to vector<8x256xf32>
    %302 = arith.mulf %300, %301 : vector<8x256xf32>
    %303 = arith.addf %297, %302 : vector<8x256xf32>
    %304 = vector.extract_strided_slice %273 {offsets = [0, 5], sizes = [8, 1], strides = [1, 1]} : vector<8x8xf32> to vector<8x1xf32>
    %305 = vector.extract_strided_slice %272 {offsets = [5, 0], sizes = [1, 256], strides = [1, 1]} : vector<8x256xf32> to vector<1x256xf32>
    %306 = vector.broadcast %304 : vector<8x1xf32> to vector<8x256xf32>
    %307 = vector.broadcast %305 : vector<1x256xf32> to vector<8x256xf32>
    %308 = arith.mulf %306, %307 : vector<8x256xf32>
    %309 = arith.addf %303, %308 : vector<8x256xf32>
    %310 = vector.extract_strided_slice %273 {offsets = [0, 6], sizes = [8, 1], strides = [1, 1]} : vector<8x8xf32> to vector<8x1xf32>
    %311 = vector.extract_strided_slice %272 {offsets = [6, 0], sizes = [1, 256], strides = [1, 1]} : vector<8x256xf32> to vector<1x256xf32>
    %312 = vector.broadcast %310 : vector<8x1xf32> to vector<8x256xf32>
    %313 = vector.broadcast %311 : vector<1x256xf32> to vector<8x256xf32>
    %314 = arith.mulf %312, %313 : vector<8x256xf32>
    %315 = arith.addf %309, %314 : vector<8x256xf32>
    %316 = vector.extract_strided_slice %273 {offsets = [0, 7], sizes = [8, 1], strides = [1, 1]} : vector<8x8xf32> to vector<8x1xf32>
    %317 = vector.extract_strided_slice %272 {offsets = [7, 0], sizes = [1, 256], strides = [1, 1]} : vector<8x256xf32> to vector<1x256xf32>
    %318 = vector.broadcast %316 : vector<8x1xf32> to vector<8x256xf32>
    %319 = vector.broadcast %317 : vector<1x256xf32> to vector<8x256xf32>
    %320 = arith.mulf %318, %319 : vector<8x256xf32>
    %321 = arith.addf %315, %320 : vector<8x256xf32>
    %322 = arith.negf %321 : vector<8x256xf32>
    %323 = math.exp %322 : vector<8x256xf32>
    %cst_31 = arith.constant 1.000000e+00 : f32
    %324 = vector.broadcast %cst_31 : f32 to vector<8x256xf32>
    %325 = arith.addf %324, %323 : vector<8x256xf32>
    %326 = arith.divf %324, %325 : vector<8x256xf32>
    %327 = arith.mulf %321, %326 : vector<8x256xf32>
    %328 = arith.truncf %327 : vector<8x256xf32> to vector<8x256xbf16>
    %c0_32 = arith.constant 0 : index
    %c0_33 = arith.constant 0 : index
    %c0_34 = arith.constant 0 : index
    %329 = vector.load %arg16[%c0_32, %c0_33, %c0_34] : memref<1x8x256xbf16, #tpu.memory_space<vmem>>, vector<1x8x256xbf16>
    %330 = vector.shape_cast %329 : vector<1x8x256xbf16> to vector<8x256xbf16>
    %331 = vector.shape_cast %328 : vector<8x256xbf16> to vector<1x8x256xbf16>
    tpu.vector_store %arg16[%c0_32, %c0_33, %c0_34], %331 {strides = array<i32>} : memref<1x8x256xbf16, #tpu.memory_space<vmem>>, vector<1x8x256xbf16>,
    return
  }
  func.func @transform_0(%arg0: i32, %arg1: i32) -> (i32, i32, i32) {
    %c0_i32 = arith.constant 0 : i32
    %c0_i32_0 = arith.constant 0 : i32
    return %arg0, %c0_i32, %arg1 : i32, i32, i32
  }
  func.func @transform_1(%arg0: i32, %arg1: i32) -> (i32, i32) {
    %c0_i32 = arith.constant 0 : i32
    %c0_i32_0 = arith.constant 0 : i32
    %c0_i32_1 = arith.constant 0 : i32
    return %c0_i32, %c0_i32_0 : i32, i32
  }
  func.func @transform_2(%arg0: i32, %arg1: i32) -> (i32, i32) {
    %c0_i32 = arith.constant 0 : i32
    %c0_i32_0 = arith.constant 0 : i32
    %c0_i32_1 = arith.constant 0 : i32
    return %c0_i32, %c0_i32_0 : i32, i32
  }
  func.func @transform_3(%arg0: i32, %arg1: i32) -> (i32, i32) {
    %c0_i32 = arith.constant 0 : i32
    %c0_i32_0 = arith.constant 0 : i32
    %c0_i32_1 = arith.constant 0 : i32
    return %c0_i32, %c0_i32_0 : i32, i32
  }
  func.func @transform_4(%arg0: i32, %arg1: i32) -> (i32, i32) {
    %c0_i32 = arith.constant 0 : i32
    %c0_i32_0 = arith.constant 0 : i32
    %c0_i32_1 = arith.constant 0 : i32
    return %c0_i32, %c0_i32_0 : i32, i32
  }
  func.func @transform_5(%arg0: i32, %arg1: i32) -> (i32, i32) {
    %c0_i32 = arith.constant 0 : i32
    %c0_i32_0 = arith.constant 0 : i32
    %c0_i32_1 = arith.constant 0 : i32
    return %c0_i32, %c0_i32_0 : i32, i32
  }
  func.func @transform_6(%arg0: i32, %arg1: i32) -> (i32, i32) {
    %c0_i32 = arith.constant 0 : i32
    %c0_i32_0 = arith.constant 0 : i32
    %c0_i32_1 = arith.constant 0 : i32
    return %c0_i32, %c0_i32_0 : i32, i32
  }
  func.func @transform_7(%arg0: i32, %arg1: i32) -> (i32, i32) {
    %c0_i32 = arith.constant 0 : i32
    %c0_i32_0 = arith.constant 0 : i32
    %c0_i32_1 = arith.constant 0 : i32
    return %c0_i32, %c0_i32_0 : i32, i32
  }
  func.func @transform_8(%arg0: i32, %arg1: i32) -> (i32, i32) {
    %c0_i32 = arith.constant 0 : i32
    %c0_i32_0 = arith.constant 0 : i32
    %c0_i32_1 = arith.constant 0 : i32
    return %c0_i32, %c0_i32_0 : i32, i32
  }
  func.func @transform_9(%arg0: i32, %arg1: i32) -> (i32, i32) {
    %c0_i32 = arith.constant 0 : i32
    %c0_i32_0 = arith.constant 0 : i32
    %c0_i32_1 = arith.constant 0 : i32
    return %c0_i32, %c0_i32_0 : i32, i32
  }
  func.func @transform_10(%arg0: i32, %arg1: i32) -> (i32, i32) {
    %c0_i32 = arith.constant 0 : i32
    %c0_i32_0 = arith.constant 0 : i32
    %c0_i32_1 = arith.constant 0 : i32
    return %c0_i32, %c0_i32_0 : i32, i32
  }
  func.func @transform_11(%arg0: i32, %arg1: i32) -> (i32, i32) {
    %c0_i32 = arith.constant 0 : i32
    %c0_i32_0 = arith.constant 0 : i32
    %c0_i32_1 = arith.constant 0 : i32
    return %c0_i32, %c0_i32_0 : i32, i32
  }
  func.func @transform_12(%arg0: i32, %arg1: i32) -> (i32, i32) {
    %c0_i32 = arith.constant 0 : i32
    %c0_i32_0 = arith.constant 0 : i32
    %c0_i32_1 = arith.constant 0 : i32
    return %c0_i32, %c0_i32_0 : i32, i32
  }
  func.func @transform_13(%arg0: i32, %arg1: i32) -> (i32, i32) {
    %c0_i32 = arith.constant 0 : i32
    %c0_i32_0 = arith.constant 0 : i32
    %c0_i32_1 = arith.constant 0 : i32
    return %c0_i32, %c0_i32_0 : i32, i32
  }
  func.func @transform_14(%arg0: i32, %arg1: i32) -> (i32, i32, i32) {
    %c0_i32 = arith.constant 0 : i32
    %c0_i32_0 = arith.constant 0 : i32
    return %arg0, %c0_i32, %arg1 : i32, i32, i32
  }
}

</mosaic_0001>

<llo_original>
// kernel: tpu_custom_call.1
$region0: #{tpu_custom_call.1}
  #allocation0 [shape = 'u32[]', space=smem, size = 0x4, offset = 0x4, fixed_abs, tag = 'smem constant byte address 0x4 - core index']
  #allocation1 [shape = 'u32[72,128]{1,0:T(1,128)}', space=vmem, size = 0x9000, scoped, tag = 'internal scratch']
  %s0 = inlined_call_operand.vmem [shape: bf16[2,4,256], index: 0, kind: input, shape index: {}]
  %s1 = inlined_call_operand.vmem [shape: f32[4,4], index: 1, kind: input, shape index: {}]
  %s2 = inlined_call_operand.vmem [shape: f32[4,1], index: 2, kind: input, shape index: {}]
  %s3 = inlined_call_operand.vmem [shape: f32[4,4], index: 3, kind: input, shape index: {}]
  %s4 = inlined_call_operand.vmem [shape: f32[4,1], index: 4, kind: input, shape index: {}]
  %s5 = inlined_call_operand.vmem [shape: f32[8,4], index: 5, kind: input, shape index: {}]
  %s6 = inlined_call_operand.vmem [shape: f32[8,1], index: 6, kind: input, shape index: {}]
  %s7 = inlined_call_operand.vmem [shape: f32[8,8], index: 7, kind: input, shape index: {}]
  %s8 = inlined_call_operand.vmem [shape: f32[8,1], index: 8, kind: input, shape index: {}]
  %s9 = inlined_call_operand.vmem [shape: f32[8,4], index: 9, kind: input, shape index: {}]
  %s10 = inlined_call_operand.vmem [shape: f32[8,4], index: 10, kind: input, shape index: {}]
  %s11 = inlined_call_operand.vmem [shape: f32[8,8], index: 11, kind: input, shape index: {}]
  %s12 = inlined_call_operand.vmem [shape: f32[8,8], index: 12, kind: input, shape index: {}]
  %s13 = inlined_call_operand.vmem [shape: f32[8,1], index: 13, kind: input, shape index: {}]
  %s14 = inlined_call_operand.hbm [shape: bf16[2,8,256], index: 14, kind: output, shape index: {}]
  %s15 = sld [smem:[#allocation0]]
  $region89: #{tpu_custom_call.1} parent=0
    _
  %s17 = ssub.s32 1, %s15
  %s18 = scalar_select 0, %s17, %s15
  $region1: #{tpu_custom_call.1} parent=0
    #allocation2 [shape = 'u8[8192]{0}', space=vmem, size = 0x2000, scoped, tag = 'output window, operand 0']
    #allocation3 [shape = 's32[2]{0}', space=sflag, size = 0x8, scoped, tag = 'scoped memory for tpu_custom_call.1']
    %19 = vsyncpa [#allocation3], 0
    %s20 = scalar_lea.sflag [#allocation3], 1
    %21 = vsyncpa %s20, 0
    loop: start=0, step=1, limit=4
    $region2: #{tpu_custom_call.1} parent=1 // loop_pre_header
      _
    $region3: #{tpu_custom_call.1} parent=1 // loop_header
      %s23 = sphi 0, %s27
      %p24 = scmp.ge.s32.totalorder %s23, 4
      %s30 = sphi 0, %s42
      %s31 = sphi 0, %s38
      %s32 = sphi 0, %s30
      %s33 = sphi 0, %s31
      %s34 = sphi 0, %s32
      %s35 = sphi 0, %s33
      %s47 = sphi 0, %s49
      %s50 = sphi 0, %s47
      %s51 = sphi 0, %s50
      %s67 = sphi 0, %s51
      %s71 = sphi 0, %s71
      %s73 = sphi 0, %s71
      %s74 = sphi 0, %s73
      %s88 = sphi 0, %s74
      %s92 = sphi 0, %s92
      %s94 = sphi 0, %s92
      %s95 = sphi 0, %s94
      %s109 = sphi 0, %s95
      %s113 = sphi 0, %s113
      %s115 = sphi 0, %s113
      %s116 = sphi 0, %s115
      %s130 = sphi 0, %s116
      %s134 = sphi 0, %s134
      %s136 = sphi 0, %s134
      %s137 = sphi 0, %s136
      %s151 = sphi 0, %s137
      %s155 = sphi 0, %s155
      %s157 = sphi 0, %s155
      %s158 = sphi 0, %s157
      %s172 = sphi 0, %s158
      %s176 = sphi 0, %s176
      %s178 = sphi 0, %s176
      %s179 = sphi 0, %s178
      %s193 = sphi 0, %s179
      %s197 = sphi 0, %s197
      %s199 = sphi 0, %s197
      %s200 = sphi 0, %s199
      %s214 = sphi 0, %s200
      %s218 = sphi 0, %s218
      %s220 = sphi 0, %s218
      %s221 = sphi 0, %s220
      %s235 = sphi 0, %s221
      %s239 = sphi 0, %s239
      %s241 = sphi 0, %s239
      %s242 = sphi 0, %s241
      %s256 = sphi 0, %s242
      %s260 = sphi 0, %s260
      %s262 = sphi 0, %s260
      %s263 = sphi 0, %s262
      %s277 = sphi 0, %s263
      %s281 = sphi 0, %s281
      %s283 = sphi 0, %s281
      %s284 = sphi 0, %s283
      %s298 = sphi 0, %s284
      %s302 = sphi 0, %s302
      %s304 = sphi 0, %s302
      %s305 = sphi 0, %s304
      %s319 = sphi 0, %s305
      %s323 = sphi 0, %s323
      %s325 = sphi 0, %s323
      %s326 = sphi 0, %s325
      %s340 = sphi 0, %s326
      %s348 = sphi 0, %s350
      %s351 = sphi 0, %s348
      %s352 = sphi 0, %s351
      %s368 = sphi 0, %s352
    $region4: #{tpu_custom_call.1} parent=1 // loop_header_branch
      %26 = sbr.rel (%p24) target = $region8
    $region5: #{tpu_custom_call.1} parent=1 // loop_body
      %s28 = ssub.s32 %s23, 1
      %s29 = ssub.s32 %s23, 2
      %s36 = sadd.s32 1, %s31
      %p37 = scmp.ge.s32.totalorder %s36, 1
      %s38 = scalar_select %p37, 0, %s36
      %s39 = sadd.s32 1, %s30
      %s40 = scalar_select %p37, %s39, %s30
      %p41 = scmp.ge.s32.totalorder %s40, 2
      %s42 = scalar_select %p41, 0, %s40
      %s43 = ssub.s32 %s30, %s42
      %s44 = ssub.s32 %s31, %s38
      %s45 = sor.u32 %s43, %s44
      %p46 = scmp.eq.s32.totalorder %s45, 0
      %s48 = sadd.s32 %s47, 1
      %s49 = scalar_select %p46, %s47, %s48
      %p52 = pneg %p46
      %p53 = scmp.eq.s32.totalorder %s23, 1
      %p54 = por %p52, %p53
      %p55 = scmp.ne.s32.totalorder %s47, %s50
      %p56 = scmp.eq.s32.totalorder %s23, 0
      %p57 = por %p55, %p56
      %p58 = scmp.ne.s32.totalorder %s47, %s50
      %p59 = scmp.eq.s32.totalorder %s28, 1
      %p60 = por %p58, %p59
      %p61 = scmp.ne.s32.totalorder %s50, %s51
      %p62 = scmp.eq.s32.totalorder %s28, 0
      %p63 = por %p61, %p62
      %p64 = scmp.ne.s32.totalorder %s50, %s51
      %p65 = scmp.eq.s32.totalorder %s29, 1
      %p66 = por %p64, %p65
      %p68 = scmp.ne.s32.totalorder %s51, %s67
      %p69 = scmp.eq.s32.totalorder %s29, 0
      %p70 = por %p68, %p69
      %s72 = sadd.s32 %s71, 1
      %p75 = scmp.eq.s32.totalorder %s23, 1
      %p76 = scmp.ne.s32.totalorder %s71, %s73
      %p77 = scmp.eq.s32.totalorder %s23, 0
      %p78 = por %p76, %p77
      %p79 = scmp.ne.s32.totalorder %s71, %s73
      %p80 = scmp.eq.s32.totalorder %s28, 1
      %p81 = por %p79, %p80
      %p82 = scmp.ne.s32.totalorder %s73, %s74
      %p83 = scmp.eq.s32.totalorder %s28, 0
      %p84 = por %p82, %p83
      %p85 = scmp.ne.s32.totalorder %s73, %s74
      %p86 = scmp.eq.s32.totalorder %s29, 1
      %p87 = por %p85, %p86
      %p89 = scmp.ne.s32.totalorder %s74, %s88
      %p90 = scmp.eq.s32.totalorder %s29, 0
      %p91 = por %p89, %p90
      %s93 = sadd.s32 %s92, 1
      %p96 = scmp.eq.s32.totalorder %s23, 1
      %p97 = scmp.ne.s32.totalorder %s92, %s94
      %p98 = scmp.eq.s32.totalorder %s23, 0
      %p99 = por %p97, %p98
      %p100 = scmp.ne.s32.totalorder %s92, %s94
      %p101 = scmp.eq.s32.totalorder %s28, 1
      %p102 = por %p100, %p101
      %p103 = scmp.ne.s32.totalorder %s94, %s95
      %p104 = scmp.eq.s32.totalorder %s28, 0
      %p105 = por %p103, %p104
      %p106 = scmp.ne.s32.totalorder %s94, %s95
      %p107 = scmp.eq.s32.totalorder %s29, 1
      %p108 = por %p106, %p107
      %p110 = scmp.ne.s32.totalorder %s95, %s109
      %p111 = scmp.eq.s32.totalorder %s29, 0
      %p112 = por %p110, %p111
      %s114 = sadd.s32 %s113, 1
      %p117 = scmp.eq.s32.totalorder %s23, 1
      %p118 = scmp.ne.s32.totalorder %s113, %s115
      %p119 = scmp.eq.s32.totalorder %s23, 0
      %p120 = por %p118, %p119
      %p121 = scmp.ne.s32.totalorder %s113, %s115
      %p122 = scmp.eq.s32.totalorder %s28, 1
      %p123 = por %p121, %p122
      %p124 = scmp.ne.s32.totalorder %s115, %s116
      %p125 = scmp.eq.s32.totalorder %s28, 0
      %p126 = por %p124, %p125
      %p127 = scmp.ne.s32.totalorder %s115, %s116
      %p128 = scmp.eq.s32.totalorder %s29, 1
      %p129 = por %p127, %p128
      %p131 = scmp.ne.s32.totalorder %s116, %s130
      %p132 = scmp.eq.s32.totalorder %s29, 0
      %p133 = por %p131, %p132
      %s135 = sadd.s32 %s134, 1
      %p138 = scmp.eq.s32.totalorder %s23, 1
      %p139 = scmp.ne.s32.totalorder %s134, %s136
      %p140 = scmp.eq.s32.totalorder %s23, 0
      %p141 = por %p139, %p140
      %p142 = scmp.ne.s32.totalorder %s134, %s136
      %p143 = scmp.eq.s32.totalorder %s28, 1
      %p144 = por %p142, %p143
      %p145 = scmp.ne.s32.totalorder %s136, %s137
      %p146 = scmp.eq.s32.totalorder %s28, 0
      %p147 = por %p145, %p146
      %p148 = scmp.ne.s32.totalorder %s136, %s137
      %p149 = scmp.eq.s32.totalorder %s29, 1
      %p150 = por %p148, %p149
      %p152 = scmp.ne.s32.totalorder %s137, %s151
      %p153 = scmp.eq.s32.totalorder %s29, 0
      %p154 = por %p152, %p153
      %s156 = sadd.s32 %s155, 1
      %p159 = scmp.eq.s32.totalorder %s23, 1
      %p160 = scmp.ne.s32.totalorder %s155, %s157
      %p161 = scmp.eq.s32.totalorder %s23, 0
      %p162 = por %p160, %p161
      %p163 = scmp.ne.s32.totalorder %s155, %s157
      %p164 = scmp.eq.s32.totalorder %s28, 1
      %p165 = por %p163, %p164
      %p166 = scmp.ne.s32.totalorder %s157, %s158
      %p167 = scmp.eq.s32.totalorder %s28, 0
      %p168 = por %p166, %p167
      %p169 = scmp.ne.s32.totalorder %s157, %s158
      %p170 = scmp.eq.s32.totalorder %s29, 1
      %p171 = por %p169, %p170
      %p173 = scmp.ne.s32.totalorder %s158, %s172
      %p174 = scmp.eq.s32.totalorder %s29, 0
      %p175 = por %p173, %p174
      %s177 = sadd.s32 %s176, 1
      %p180 = scmp.eq.s32.totalorder %s23, 1
      %p181 = scmp.ne.s32.totalorder %s176, %s178
      %p182 = scmp.eq.s32.totalorder %s23, 0
      %p183 = por %p181, %p182
      %p184 = scmp.ne.s32.totalorder %s176, %s178
      %p185 = scmp.eq.s32.totalorder %s28, 1
      %p186 = por %p184, %p185
      %p187 = scmp.ne.s32.totalorder %s178, %s179
      %p188 = scmp.eq.s32.totalorder %s28, 0
      %p189 = por %p187, %p188
      %p190 = scmp.ne.s32.totalorder %s178, %s179
      %p191 = scmp.eq.s32.totalorder %s29, 1
      %p192 = por %p190, %p191
      %p194 = scmp.ne.s32.totalorder %s179, %s193
      %p195 = scmp.eq.s32.totalorder %s29, 0
      %p196 = por %p194, %p195
      %s198 = sadd.s32 %s197, 1
      %p201 = scmp.eq.s32.totalorder %s23, 1
      %p202 = scmp.ne.s32.totalorder %s197, %s199
      %p203 = scmp.eq.s32.totalorder %s23, 0
      %p204 = por %p202, %p203
      %p205 = scmp.ne.s32.totalorder %s197, %s199
      %p206 = scmp.eq.s32.totalorder %s28, 1
      %p207 = por %p205, %p206
      %p208 = scmp.ne.s32.totalorder %s199, %s200
      %p209 = scmp.eq.s32.totalorder %s28, 0
      %p210 = por %p208, %p209
      %p211 = scmp.ne.s32.totalorder %s199, %s200
      %p212 = scmp.eq.s32.totalorder %s29, 1
      %p213 = por %p211, %p212
      %p215 = scmp.ne.s32.totalorder %s200, %s214
      %p216 = scmp.eq.s32.totalorder %s29, 0
      %p217 = por %p215, %p216
      %s219 = sadd.s32 %s218, 1
      %p222 = scmp.eq.s32.totalorder %s23, 1
      %p223 = scmp.ne.s32.totalorder %s218, %s220
      %p224 = scmp.eq.s32.totalorder %s23, 0
      %p225 = por %p223, %p224
      %p226 = scmp.ne.s32.totalorder %s218, %s220
      %p227 = scmp.eq.s32.totalorder %s28, 1
      %p228 = por %p226, %p227
      %p229 = scmp.ne.s32.totalorder %s220, %s221
      %p230 = scmp.eq.s32.totalorder %s28, 0
      %p231 = por %p229, %p230
      %p232 = scmp.ne.s32.totalorder %s220, %s221
      %p233 = scmp.eq.s32.totalorder %s29, 1
      %p234 = por %p232, %p233
      %p236 = scmp.ne.s32.totalorder %s221, %s235
      %p237 = scmp.eq.s32.totalorder %s29, 0
      %p238 = por %p236, %p237
      %s240 = sadd.s32 %s239, 1
      %p243 = scmp.eq.s32.totalorder %s23, 1
      %p244 = scmp.ne.s32.totalorder %s239, %s241
      %p245 = scmp.eq.s32.totalorder %s23, 0
      %p246 = por %p244, %p245
      %p247 = scmp.ne.s32.totalorder %s239, %s241
      %p248 = scmp.eq.s32.totalorder %s28, 1
      %p249 = por %p247, %p248
      %p250 = scmp.ne.s32.totalorder %s241, %s242
      %p251 = scmp.eq.s32.totalorder %s28, 0
      %p252 = por %p250, %p251
      %p253 = scmp.ne.s32.totalorder %s241, %s242
      %p254 = scmp.eq.s32.totalorder %s29, 1
      %p255 = por %p253, %p254
      %p257 = scmp.ne.s32.totalorder %s242, %s256
      %p258 = scmp.eq.s32.totalorder %s29, 0
      %p259 = por %p257, %p258
      %s261 = sadd.s32 %s260, 1
      %p264 = scmp.eq.s32.totalorder %s23, 1
      %p265 = scmp.ne.s32.totalorder %s260, %s262
      %p266 = scmp.eq.s32.totalorder %s23, 0
      %p267 = por %p265, %p266
      %p268 = scmp.ne.s32.totalorder %s260, %s262
      %p269 = scmp.eq.s32.totalorder %s28, 1
      %p270 = por %p268, %p269
      %p271 = scmp.ne.s32.totalorder %s262, %s263
      %p272 = scmp.eq.s32.totalorder %s28, 0
      %p273 = por %p271, %p272
      %p274 = scmp.ne.s32.totalorder %s262, %s263
      %p275 = scmp.eq.s32.totalorder %s29, 1
      %p276 = por %p274, %p275
      %p278 = scmp.ne.s32.totalorder %s263, %s277
      %p279 = scmp.eq.s32.totalorder %s29, 0
      %p280 = por %p278, %p279
      %s282 = sadd.s32 %s281, 1
      %p285 = scmp.eq.s32.totalorder %s23, 1
      %p286 = scmp.ne.s32.totalorder %s281, %s283
      %p287 = scmp.eq.s32.totalorder %s23, 0
      %p288 = por %p286, %p287
      %p289 = scmp.ne.s32.totalorder %s281, %s283
      %p290 = scmp.eq.s32.totalorder %s28, 1
      %p291 = por %p289, %p290
      %p292 = scmp.ne.s32.totalorder %s283, %s284
      %p293 = scmp.eq.s32.totalorder %s28, 0
      %p294 = por %p292, %p293
      %p295 = scmp.ne.s32.totalorder %s283, %s284
      %p296 = scmp.eq.s32.totalorder %s29, 1
      %p297 = por %p295, %p296
      %p299 = scmp.ne.s32.totalorder %s284, %s298
      %p300 = scmp.eq.s32.totalorder %s29, 0
      %p301 = por %p299, %p300
      %s303 = sadd.s32 %s302, 1
      %p306 = scmp.eq.s32.totalorder %s23, 1
      %p307 = scmp.ne.s32.totalorder %s302, %s304
      %p308 = scmp.eq.s32.totalorder %s23, 0
      %p309 = por %p307, %p308
      %p310 = scmp.ne.s32.totalorder %s302, %s304
      %p311 = scmp.eq.s32.totalorder %s28, 1
      %p312 = por %p310, %p311
      %p313 = scmp.ne.s32.totalorder %s304, %s305
      %p314 = scmp.eq.s32.totalorder %s28, 0
      %p315 = por %p313, %p314
      %p316 = scmp.ne.s32.totalorder %s304, %s305
      %p317 = scmp.eq.s32.totalorder %s29, 1
      %p318 = por %p316, %p317
      %p320 = scmp.ne.s32.totalorder %s305, %s319
      %p321 = scmp.eq.s32.totalorder %s29, 0
      %p322 = por %p320, %p321
      %s324 = sadd.s32 %s323, 1
      %p327 = scmp.eq.s32.totalorder %s23, 1
      %p328 = scmp.ne.s32.totalorder %s323, %s325
      %p329 = scmp.eq.s32.totalorder %s23, 0
      %p330 = por %p328, %p329
      %p331 = scmp.ne.s32.totalorder %s323, %s325
      %p332 = scmp.eq.s32.totalorder %s28, 1
      %p333 = por %p331, %p332
      %p334 = scmp.ne.s32.totalorder %s325, %s326
      %p335 = scmp.eq.s32.totalorder %s28, 0
      %p336 = por %p334, %p335
      %p337 = scmp.ne.s32.totalorder %s325, %s326
      %p338 = scmp.eq.s32.totalorder %s29, 1
      %p339 = por %p337, %p338
      %p341 = scmp.ne.s32.totalorder %s326, %s340
      %p342 = scmp.eq.s32.totalorder %s29, 0
      %p343 = por %p341, %p342
      %s344 = ssub.s32 %s30, %s42
      %s345 = ssub.s32 %s31, %s38
      %s346 = sor.u32 %s344, %s345
      %p347 = scmp.eq.s32.totalorder %s346, 0
      %s349 = sadd.s32 %s348, 1
      %s350 = scalar_select %p347, %s348, %s349
      %p353 = pneg %p347
      %p354 = scmp.eq.s32.totalorder %s23, 1
      %p355 = por %p353, %p354
      %p356 = scmp.ne.s32.totalorder %s348, %s351
      %p357 = scmp.eq.s32.totalorder %s23, 0
      %p358 = por %p356, %p357
      %p359 = scmp.ne.s32.totalorder %s348, %s351
      %p360 = scmp.eq.s32.totalorder %s28, 1
      %p361 = por %p359, %p360
      %p362 = scmp.ne.s32.totalorder %s351, %s352
      %p363 = scmp.eq.s32.totalorder %s28, 0
      %p364 = por %p362, %p363
      %p365 = scmp.ne.s32.totalorder %s351, %s352
      %p366 = scmp.eq.s32.totalorder %s29, 1
      %p367 = por %p365, %p366
      %p369 = scmp.ne.s32.totalorder %s352, %s368
      %p370 = scmp.eq.s32.totalorder %s29, 0
      %p371 = por %p369, %p370
      %p372 = scmp.le.s32.totalorder 1, %s23
      %p373 = scmp.lt.s32.totalorder %s23, 3
      %p374 = pnand %p372, %p373
      %p375 = pneg %p374
      // Predicated region
      $region9: #{tpu_custom_call.1} parent=5 // pred_check
        _
      $region10: #{tpu_custom_call.1} parent=5 // pred_check_branch
        %377 = sbr.rel (%p374) target = $region12
      $region11: #{tpu_custom_call.1} parent=5 // pred_region
        %s378 = ssub.s32 %s23, 1
        // Predicated region
        $region13: #{tpu_custom_call.1} parent=11 // pred_check
          %p379 = pneg %p84
        $region14: #{tpu_custom_call.1} parent=11 // pred_check_branch
          %381 = sbr.rel (%p379) target = $region16
        $region15: #{tpu_custom_call.1} parent=11 // pred_region
          _
        $region16: #{tpu_custom_call.1} parent=11 // pred_fallthru
          _
        // Predicated region
        $region17: #{tpu_custom_call.1} parent=11 // pred_check
          %p382 = pneg %p105
        $region18: #{tpu_custom_call.1} parent=11 // pred_check_branch
          %384 = sbr.rel (%p382) target = $region20
        $region19: #{tpu_custom_call.1} parent=11 // pred_region
          _
        $region20: #{tpu_custom_call.1} parent=11 // pred_fallthru
          _
        // Predicated region
        $region21: #{tpu_custom_call.1} parent=11 // pred_check
          %p385 = pneg %p126
        $region22: #{tpu_custom_call.1} parent=11 // pred_check_branch
          %387 = sbr.rel (%p385) target = $region24
        $region23: #{tpu_custom_call.1} parent=11 // pred_region
          _
        $region24: #{tpu_custom_call.1} parent=11 // pred_fallthru
          _
        // Predicated region
        $region25: #{tpu_custom_call.1} parent=11 // pred_check
          %p388 = pneg %p147
        $region26: #{tpu_custom_call.1} parent=11 // pred_check_branch
          %390 = sbr.rel (%p388) target = $region28
        $region27: #{tpu_custom_call.1} parent=11 // pred_region
          _
        $region28: #{tpu_custom_call.1} parent=11 // pred_fallthru
          _
        // Predicated region
        $region29: #{tpu_custom_call.1} parent=11 // pred_check
          %p391 = pneg %p168
        $region30: #{tpu_custom_call.1} parent=11 // pred_check_branch
          %393 = sbr.rel (%p391) target = $region32
        $region31: #{tpu_custom_call.1} parent=11 // pred_region
          _
        $region32: #{tpu_custom_call.1} parent=11 // pred_fallthru
          _
        // Predicated region
        $region33: #{tpu_custom_call.1} parent=11 // pred_check
          %p394 = pneg %p189
        $region34: #{tpu_custom_call.1} parent=11 // pred_check_branch
          %396 = sbr.rel (%p394) target = $region36
        $region35: #{tpu_custom_call.1} parent=11 // pred_region
          _
        $region36: #{tpu_custom_call.1} parent=11 // pred_fallthru
          _
        // Predicated region
        $region37: #{tpu_custom_call.1} parent=11 // pred_check
          %p397 = pneg %p210
        $region38: #{tpu_custom_call.1} parent=11 // pred_check_branch
          %399 = sbr.rel (%p397) target = $region40
        $region39: #{tpu_custom_call.1} parent=11 // pred_region
          _
        $region40: #{tpu_custom_call.1} parent=11 // pred_fallthru
          _
        // Predicated region
        $region41: #{tpu_custom_call.1} parent=11 // pred_check
          %p400 = pneg %p231
        $region42: #{tpu_custom_call.1} parent=11 // pred_check_branch
          %402 = sbr.rel (%p400) target = $region44
        $region43: #{tpu_custom_call.1} parent=11 // pred_region
          _
        $region44: #{tpu_custom_call.1} parent=11 // pred_fallthru
          _
        // Predicated region
        $region45: #{tpu_custom_call.1} parent=11 // pred_check
          %p403 = pneg %p252
        $region46: #{tpu_custom_call.1} parent=11 // pred_check_branch
          %405 = sbr.rel (%p403) target = $region48
        $region47: #{tpu_custom_call.1} parent=11 // pred_region
          _
        $region48: #{tpu_custom_call.1} parent=11 // pred_fallthru
          _
        // Predicated region
        $region49: #{tpu_custom_call.1} parent=11 // pred_check
          %p406 = pneg %p273
        $region50: #{tpu_custom_call.1} parent=11 // pred_check_branch
          %408 = sbr.rel (%p406) target = $region52
        $region51: #{tpu_custom_call.1} parent=11 // pred_region
          _
        $region52: #{tpu_custom_call.1} parent=11 // pred_fallthru
          _
        // Predicated region
        $region53: #{tpu_custom_call.1} parent=11 // pred_check
          %p409 = pneg %p294
        $region54: #{tpu_custom_call.1} parent=11 // pred_check_branch
          %411 = sbr.rel (%p409) target = $region56
        $region55: #{tpu_custom_call.1} parent=11 // pred_region
          _
        $region56: #{tpu_custom_call.1} parent=11 // pred_fallthru
          _
        // Predicated region
        $region57: #{tpu_custom_call.1} parent=11 // pred_check
          %p412 = pneg %p315
        $region58: #{tpu_custom_call.1} parent=11 // pred_check_branch
          %414 = sbr.rel (%p412) target = $region60
        $region59: #{tpu_custom_call.1} parent=11 // pred_region
          _
        $region60: #{tpu_custom_call.1} parent=11 // pred_fallthru
          _
        // Predicated region
        $region61: #{tpu_custom_call.1} parent=11 // pred_check
          %p415 = pneg %p336
        $region62: #{tpu_custom_call.1} parent=11 // pred_check_branch
          %417 = sbr.rel (%p415) target = $region64
        $region63: #{tpu_custom_call.1} parent=11 // pred_region
          _
        $region64: #{tpu_custom_call.1} parent=11 // pred_fallthru
          _
      $region12: #{tpu_custom_call.1} parent=5 // pred_fallthru
        _
      %p418 = scmp.lt.s32.totalorder %s23, 2
      // Predicated region
      $region65: #{tpu_custom_call.1} parent=5 // pred_check
        %p419 = pneg %p418
      $region66: #{tpu_custom_call.1} parent=5 // pred_check_branch
        %421 = sbr.rel (%p419) target = $region68
      $region67: #{tpu_custom_call.1} parent=5 // pred_region
        // Predicated region
        $region69: #{tpu_custom_call.1} parent=67 // pred_check
          %p422 = pneg %p57
        $region70: #{tpu_custom_call.1} parent=67 // pred_check_branch
          %424 = sbr.rel (%p422) target = $region72
        $region71: #{tpu_custom_call.1} parent=67 // pred_region
          %s425 = smul.u32 2, %s31
          %p426 = scmp.lt.s32.totalorder %s30, 1
          %s427 = scalar_select %p426, %s30, 1
          %p428 = scmp.lt.s32.totalorder %s425, 1
          %s429 = scalar_select %p428, %s425, 1
          %s430 = smul.addr %s427, 2
          %s431 = sadd.s32 %s429, %s430
          %s432 = smul.addr %s431, 2
          %s433 = scalar_lea.vmem %s0, %s432
          %s434 = smul.u32 2, %s31
        $region72: #{tpu_custom_call.1} parent=67 // pred_fallthru
          _
      $region68: #{tpu_custom_call.1} parent=5 // pred_fallthru
        _
      %p435 = scmp.le.s32.totalorder 1, %s23
      %p436 = scmp.lt.s32.totalorder %s23, 3
      %p437 = pnand %p435, %p436
      %p438 = pneg %p437
      // Predicated region
      $region73: #{tpu_custom_call.1} parent=5 // pred_check
        _
      $region74: #{tpu_custom_call.1} parent=5 // pred_check_branch
        %440 = sbr.rel (%p437) target = $region76
      $region75: #{tpu_custom_call.1} parent=5 // pred_region
        %s441 = ssub.s32 %s23, 1
        %s442 = smul.u32 2, %s33
        %p443 = scmp.lt.s32.totalorder %s32, 1
        %s444 = scalar_select %p443, %s32, 1
        %p445 = scmp.lt.s32.totalorder %s442, 1
        %s446 = scalar_select %p445, %s442, 1
        %s447 = smul.addr %s444, 2
        %s448 = sadd.s32 %s446, %s447
        %s449 = smul.addr %s448, 2
        %s450 = scalar_lea.vmem %s0, %s449
        %p451 = pneg %p63
        %p452 = pneg %p60
        %p453 = pneg %p84
        %p454 = pneg %p81
        %p455 = pneg %p105
        %p456 = pneg %p102
        %p457 = pneg %p126
        %p458 = pneg %p123
        %p459 = pneg %p147
        %p460 = pneg %p144
        %p461 = pneg %p168
        %p462 = pneg %p165
        %p463 = pneg %p189
        %p464 = pneg %p186
        %p465 = pneg %p210
        %p466 = pneg %p207
        %p467 = pneg %p231
        %p468 = pneg %p228
        %p469 = pneg %p252
        %p470 = pneg %p249
        %p471 = pneg %p273
        %p472 = pneg %p270
        %p473 = pneg %p294
        %p474 = pneg %p291
        %p475 = pneg %p315
        %p476 = pneg %p312
        %p477 = pneg %p336
        %p478 = pneg %p333
        %p479 = pneg %p364
        %p480 = pneg %p361
        %s481 = sand.u32 %s351, 1
        %s482 = scalar_lea.sflag [#allocation3], %s481
        %s483 = sand.u32 %s351, 1
        %s484 = smul.addr %s483, 8
        %s485 = scalar_lea.vmem [#allocation2], %s484
        %s486 = smul.u32 2, %s33
        %p487 = scmp.lt.s32.totalorder %s32, 1
        %s488 = scalar_select %p487, %s32, 1
        %p489 = scmp.lt.s32.totalorder %s486, 1
        %s490 = scalar_select %p489, %s486, 1
        %s491 = smul.addr %s488, 2
        %s492 = sadd.s32 %s490, %s491
        %s493 = smul.addr %s492, 2
        %s494 = scalar_lea.vmem %s0, %s493
        %s495 = smul.u32 2, %s33
        %s496 = smul.u32 2, %s33
        %v497 = vld [vmem:[%s494] sm:$0xf]
        %v498 = vunpack.c.l.bf16 %v497
        %v499 = vld [vmem:[%s2] sm:$0xf]
        %501 = vset.pattern.permute.xlu0 0
        %502 = vperm.xlu0 %501, %v499
        %v503 = vpop.permute.xlu0 %502
        %v505 = vld [vmem:[%s1] sm:$0xf]
        %507 = vset.pattern.permute.xlu0 0
        %508 = vperm.xlu0 %507, %v505
        %v509 = vpop.permute.xlu0 %508
        %v512 = vperm.slane %v498, 0
        %v513 = vperm.slane %v498, 4
        %v516 = vperm.slane %v512, 0
        %v517 = vperm.slane %v513, 0
        %v518 = vmul.f32 %v509, %v516
        %v519 = vmul.f32 %v509, %v517
        %v520 = vadd.f32 %v503, %v518
        %v521 = vadd.f32 %v503, %v519
        %522 = vset.pattern.permute.xlu0 1
        %523 = vperm.xlu0 %522, %v505
        %v524 = vpop.permute.xlu0 %523
        %v526 = vperm.slane %v498, 1
        %v527 = vperm.slane %v498, 5
        %v530 = vperm.slane %v526, 1
        %v531 = vperm.slane %v527, 1
        %v532 = vmul.f32 %v524, %v530
        %v533 = vmul.f32 %v524, %v531
        %v534 = vadd.f32 %v520, %v532
        %v535 = vadd.f32 %v521, %v533
        %536 = vset.pattern.permute.xlu0 2
        %537 = vperm.xlu0 %536, %v505
        %v538 = vpop.permute.xlu0 %537
        %v540 = vperm.slane %v498, 2
        %v541 = vperm.slane %v498, 6
        %v544 = vperm.slane %v540, 2
        %v545 = vperm.slane %v541, 2
        %v546 = vmul.f32 %v538, %v544
        %v547 = vmul.f32 %v538, %v545
        %v548 = vadd.f32 %v534, %v546
        %v549 = vadd.f32 %v535, %v547
        %550 = vset.pattern.permute.xlu0 3
        %551 = vperm.xlu0 %550, %v505
        %v552 = vpop.permute.xlu0 %551
        %v554 = vperm.slane %v498, 3
        %v555 = vperm.slane %v498, 7
        %v558 = vperm.slane %v554, 3
        %v559 = vperm.slane %v555, 3
        %v560 = vmul.f32 %v552, %v558
        %v561 = vmul.f32 %v552, %v559
        %v562 = vadd.f32 %v548, %v560
        %v563 = vadd.f32 %v549, %v561
        %v564 = vxor.u32 %v562, 2147483648
        %v565 = vxor.u32 %v563, 2147483648
        %v566 = vmul.f32 %v564, 1.442695
        %v567 = vpow.pop %v566
        %v568 = vmul.f32 %v565, 1.442695
        %v569 = vpow.pop %v568
        %v570 = vadd.f32 %v567, 1.0
        %v571 = vadd.f32 %v569, 1.0
        %v572 = vrcp.pop %v570
        %v573 = vmul.f32 %v570, %v572
        %v574 = vsub.f32 1.0, %v573
        %v575 = vmul.f32 %v572, %v574
        %v576 = vadd.f32 %v572, %v575
        %vm577 = vweird.f32 %v570
        %vm578 = vweird.f32 %v572
        %vm579 = vmor %vm577, %vm578
        %v580 = vsel %vm579, %v572, %v576
        %v581 = vand.u32 2147483647, %v570
        %vm582 = vcmp.eq.f32.partialorder %v581, 8.507059e+37
        %v583 = vand.u32 %v570, 2147483648
        %v584 = vor.u32 1.1754944e-38, %v583
        %v585 = vsel %vm582, %v584, %v580
        %v586 = vmul.f32 1.0, %v585
        %v587 = vrcp.pop %v571
        %v588 = vmul.f32 %v571, %v587
        %v589 = vsub.f32 1.0, %v588
        %v590 = vmul.f32 %v587, %v589
        %v591 = vadd.f32 %v587, %v590
        %vm592 = vweird.f32 %v571
        %vm593 = vweird.f32 %v587
        %vm594 = vmor %vm592, %vm593
        %v595 = vsel %vm594, %v587, %v591
        %v596 = vand.u32 2147483647, %v571
        %vm597 = vcmp.eq.f32.partialorder %v596, 8.507059e+37
        %v598 = vand.u32 %v571, 2147483648
        %v599 = vor.u32 1.1754944e-38, %v598
        %v600 = vsel %vm597, %v599, %v595
        %v601 = vmul.f32 1.0, %v600
        %v602 = vmul.f32 %v562, %v586
        %v603 = vmul.f32 %v563, %v601
        %v604 = vld [vmem:[%s4] sm:$0xf]
        %606 = vset.pattern.permute.xlu0 0
        %607 = vperm.xlu0 %606, %v604
        %v608 = vpop.permute.xlu0 %607
        %v610 = vld [vmem:[%s3] sm:$0xf]
        %612 = vset.pattern.permute.xlu0 0
        %613 = vperm.xlu0 %612, %v610
        %v614 = vpop.permute.xlu0 %613
        %v616 = vmul.f32 %v614, %v516
        %v617 = vmul.f32 %v614, %v517
        %v618 = vadd.f32 %v608, %v616
        %v619 = vadd.f32 %v608, %v617
        %620 = vset.pattern.permute.xlu0 1
        %621 = vperm.xlu0 %620, %v610
        %v622 = vpop.permute.xlu0 %621
        %v624 = vmul.f32 %v622, %v530
        %v625 = vmul.f32 %v622, %v531
        %v626 = vadd.f32 %v618, %v624
        %v627 = vadd.f32 %v619, %v625
        %628 = vset.pattern.permute.xlu0 2
        %629 = vperm.xlu0 %628, %v610
        %v630 = vpop.permute.xlu0 %629
        %v632 = vmul.f32 %v630, %v544
        %v633 = vmul.f32 %v630, %v545
        %v634 = vadd.f32 %v626, %v632
        %v635 = vadd.f32 %v627, %v633
        %636 = vset.pattern.permute.xlu0 3
        %637 = vperm.xlu0 %636, %v610
        %v638 = vpop.permute.xlu0 %637
        %v640 = vmul.f32 %v638, %v558
        %v641 = vmul.f32 %v638, %v559
        %v642 = vadd.f32 %v634, %v640
        %v643 = vadd.f32 %v635, %v641
        %v644 = vxor.u32 %v642, 2147483648
        %v645 = vxor.u32 %v643, 2147483648
        %v646 = vmul.f32 %v644, 1.442695
        %v647 = vpow.pop %v646
        %v648 = vmul.f32 %v645, 1.442695
        %v649 = vpow.pop %v648
        %v650 = vadd.f32 %v647, 1.0
        %v651 = vadd.f32 %v649, 1.0
        %v652 = vrcp.pop %v650
        %v653 = vmul.f32 %v650, %v652
        %v654 = vsub.f32 1.0, %v653
        %v655 = vmul.f32 %v652, %v654
        %v656 = vadd.f32 %v652, %v655
        %vm657 = vweird.f32 %v650
        %vm658 = vweird.f32 %v652
        %vm659 = vmor %vm657, %vm658
        %v660 = vsel %vm659, %v652, %v656
        %v661 = vand.u32 2147483647, %v650
        %vm662 = vcmp.eq.f32.partialorder %v661, 8.507059e+37
        %v663 = vand.u32 %v650, 2147483648
        %v664 = vor.u32 1.1754944e-38, %v663
        %v665 = vsel %vm662, %v664, %v660
        %v666 = vmul.f32 1.0, %v665
        %v667 = vrcp.pop %v651
        %v668 = vmul.f32 %v651, %v667
        %v669 = vsub.f32 1.0, %v668
        %v670 = vmul.f32 %v667, %v669
        %v671 = vadd.f32 %v667, %v670
        %vm672 = vweird.f32 %v651
        %vm673 = vweird.f32 %v667
        %vm674 = vmor %vm672, %vm673
        %v675 = vsel %vm674, %v667, %v671
        %v676 = vand.u32 2147483647, %v651
        %vm677 = vcmp.eq.f32.partialorder %v676, 8.507059e+37
        %v678 = vand.u32 %v651, 2147483648
        %v679 = vor.u32 1.1754944e-38, %v678
        %v680 = vsel %vm677, %v679, %v675
        %v681 = vmul.f32 1.0, %v680
        %v682 = vmul.f32 %v642, %v666
        %v683 = vmul.f32 %v643, %v681
        %v684 = vpack.c.bf16 %v683, %v682
        %v685 = vunpack.c.l.bf16 %v684
        %v686 = vunpack.c.h.bf16 %v684
        %v687 = vld [vmem:[%s6] sm:$0xff]
        %689 = vset.pattern.permute.xlu0 0
        %690 = vperm.xlu0 %689, %v687
        %v691 = vpop.permute.xlu0 %690
        %v693 = vld [vmem:[%s5] sm:$0xff]
        %695 = vset.pattern.permute.xlu0 0
        %696 = vperm.xlu0 %695, %v693
        %v697 = vpop.permute.xlu0 %696
        %v699 = vperm.slane %v685, 0
        %v700 = vperm.slane %v686, 0
        %v701 = vmul.f32 %v697, %v699
        %v702 = vmul.f32 %v697, %v700
        %v703 = vadd.f32 %v691, %v701
        %v704 = vadd.f32 %v691, %v702
        %705 = vset.pattern.permute.xlu0 1
        %706 = vperm.xlu0 %705, %v693
        %v707 = vpop.permute.xlu0 %706
        %v709 = vperm.slane %v685, 1
        %v710 = vperm.slane %v686, 1
        %v711 = vmul.f32 %v707, %v709
        %v712 = vmul.f32 %v707, %v710
        %v713 = vadd.f32 %v703, %v711
        %v714 = vadd.f32 %v704, %v712
        %715 = vset.pattern.permute.xlu0 2
        %716 = vperm.xlu0 %715, %v693
        %v717 = vpop.permute.xlu0 %716
        %v719 = vperm.slane %v685, 2
        %v720 = vperm.slane %v686, 2
        %v721 = vmul.f32 %v717, %v719
        %v722 = vmul.f32 %v717, %v720
        %v723 = vadd.f32 %v713, %v721
        %v724 = vadd.f32 %v714, %v722
        %725 = vset.pattern.permute.xlu0 3
        %726 = vperm.xlu0 %725, %v693
        %v727 = vpop.permute.xlu0 %726
        %v729 = vperm.slane %v685, 3
        %v730 = vperm.slane %v686, 3
        %v731 = vmul.f32 %v727, %v729
        %v732 = vmul.f32 %v727, %v730
        %v733 = vadd.f32 %v723, %v731
        %v734 = vadd.f32 %v724, %v732
        %v735 = vxor.u32 %v733, 2147483648
        %v736 = vxor.u32 %v734, 2147483648
        %v737 = vmul.f32 %v735, 1.442695
        %v738 = vpow.pop %v737
        %v739 = vmul.f32 %v736, 1.442695
        %v740 = vpow.pop %v739
        %v741 = vadd.f32 %v738, 1.0
        %v742 = vadd.f32 %v740, 1.0
        %v743 = vrcp.pop %v741
        %v744 = vmul.f32 %v741, %v743
        %v745 = vsub.f32 1.0, %v744
        %v746 = vmul.f32 %v743, %v745
        %v747 = vadd.f32 %v743, %v746
        %vm748 = vweird.f32 %v741
        %vm749 = vweird.f32 %v743
        %vm750 = vmor %vm748, %vm749
        %v751 = vsel %vm750, %v743, %v747
        %v752 = vand.u32 2147483647, %v741
        %vm753 = vcmp.eq.f32.partialorder %v752, 8.507059e+37
        %v754 = vand.u32 %v741, 2147483648
        %v755 = vor.u32 1.1754944e-38, %v754
        %v756 = vsel %vm753, %v755, %v751
        %v757 = vmul.f32 1.0, %v756
        %v758 = vrcp.pop %v742
        %v759 = vmul.f32 %v742, %v758
        %v760 = vsub.f32 1.0, %v759
        %v761 = vmul.f32 %v758, %v760
        %v762 = vadd.f32 %v758, %v761
        %vm763 = vweird.f32 %v742
        %vm764 = vweird.f32 %v758
        %vm765 = vmor %vm763, %vm764
        %v766 = vsel %vm765, %v758, %v762
        %v767 = vand.u32 2147483647, %v742
        %vm768 = vcmp.eq.f32.partialorder %v767, 8.507059e+37
        %v769 = vand.u32 %v742, 2147483648
        %v770 = vor.u32 1.1754944e-38, %v769
        %v771 = vsel %vm768, %v770, %v766
        %v772 = vmul.f32 1.0, %v771
        %v773 = vmul.f32 %v733, %v757
        %v774 = vmul.f32 %v734, %v772
        %v775 = vpack.c.bf16 %v774, %v773
        %v776 = vunpack.c.l.bf16 %v775
        %v777 = vunpack.c.h.bf16 %v775
        %v778 = vld [vmem:[%s8] sm:$0xff]
        %780 = vset.pattern.permute.xlu0 0
        %781 = vperm.xlu0 %780, %v778
        %v782 = vpop.permute.xlu0 %781
        %v784 = vld [vmem:[%s7] sm:$0xff]
        %786 = vset.pattern.permute.xlu0 0
        %787 = vperm.xlu0 %786, %v784
        %v788 = vpop.permute.xlu0 %787
        %v790 = vperm.slane %v776, 0
        %v791 = vperm.slane %v777, 0
        %v792 = vmul.f32 %v788, %v790
        %v793 = vmul.f32 %v788, %v791
        %v794 = vadd.f32 %v782, %v792
        %v795 = vadd.f32 %v782, %v793
        %796 = vset.pattern.permute.xlu0 1
        %797 = vperm.xlu0 %796, %v784
        %v798 = vpop.permute.xlu0 %797
        %v800 = vperm.slane %v776, 1
        %v801 = vperm.slane %v777, 1
        %v802 = vmul.f32 %v798, %v800
        %v803 = vmul.f32 %v798, %v801
        %v804 = vadd.f32 %v794, %v802
        %v805 = vadd.f32 %v795, %v803
        %806 = vset.pattern.permute.xlu0 2
        %807 = vperm.xlu0 %806, %v784
        %v808 = vpop.permute.xlu0 %807
        %v810 = vperm.slane %v776, 2
        %v811 = vperm.slane %v777, 2
        %v812 = vmul.f32 %v808, %v810
        %v813 = vmul.f32 %v808, %v811
        %v814 = vadd.f32 %v804, %v812
        %v815 = vadd.f32 %v805, %v813
        %816 = vset.pattern.permute.xlu0 3
        %817 = vperm.xlu0 %816, %v784
        %v818 = vpop.permute.xlu0 %817
        %v820 = vperm.slane %v776, 3
        %v821 = vperm.slane %v777, 3
        %v822 = vmul.f32 %v818, %v820
        %v823 = vmul.f32 %v818, %v821
        %v824 = vadd.f32 %v814, %v822
        %v825 = vadd.f32 %v815, %v823
        %826 = vset.pattern.permute.xlu0 4
        %827 = vperm.xlu0 %826, %v784
        %v828 = vpop.permute.xlu0 %827
        %v830 = vperm.slane %v776, 4
        %v831 = vperm.slane %v777, 4
        %v832 = vmul.f32 %v828, %v830
        %v833 = vmul.f32 %v828, %v831
        %v834 = vadd.f32 %v824, %v832
        %v835 = vadd.f32 %v825, %v833
        %836 = vset.pattern.permute.xlu0 5
        %837 = vperm.xlu0 %836, %v784
        %v838 = vpop.permute.xlu0 %837
        %v840 = vperm.slane %v776, 5
        %v841 = vperm.slane %v777, 5
        %v842 = vmul.f32 %v838, %v840
        %v843 = vmul.f32 %v838, %v841
        %v844 = vadd.f32 %v834, %v842
        %v845 = vadd.f32 %v835, %v843
        %846 = vset.pattern.permute.xlu0 6
        %847 = vperm.xlu0 %846, %v784
        %v848 = vpop.permute.xlu0 %847
        %v850 = vperm.slane %v776, 6
        %v851 = vperm.slane %v777, 6
        %v852 = vmul.f32 %v848, %v850
        %v853 = vmul.f32 %v848, %v851
        %v854 = vadd.f32 %v844, %v852
        %v855 = vadd.f32 %v845, %v853
        %856 = vset.pattern.permute.xlu0 7
        %857 = vperm.xlu0 %856, %v784
        %v858 = vpop.permute.xlu0 %857
        %v860 = vperm.slane %v776, 7
        %v861 = vperm.slane %v777, 7
        %v862 = vmul.f32 %v858, %v860
        %v863 = vmul.f32 %v858, %v861
        %v864 = vadd.f32 %v854, %v862
        %v865 = vadd.f32 %v855, %v863
        %v866 = vxor.u32 %v864, 2147483648
        %v867 = vxor.u32 %v865, 2147483648
        %v868 = vmul.f32 %v866, 1.442695
        %v869 = vpow.pop %v868
        %v870 = vmul.f32 %v867, 1.442695
        %v871 = vpow.pop %v870
        %v872 = vadd.f32 %v869, 1.0
        %v873 = vadd.f32 %v871, 1.0
        %v874 = vrcp.pop %v872
        %v875 = vmul.f32 %v872, %v874
        %v876 = vsub.f32 1.0, %v875
        %v877 = vmul.f32 %v874, %v876
        %v878 = vadd.f32 %v874, %v877
        %vm879 = vweird.f32 %v872
        %vm880 = vweird.f32 %v874
        %vm881 = vmor %vm879, %vm880
        %v882 = vsel %vm881, %v874, %v878
        %v883 = vand.u32 2147483647, %v872
        %vm884 = vcmp.eq.f32.partialorder %v883, 8.507059e+37
        %v885 = vand.u32 %v872, 2147483648
        %v886 = vor.u32 1.1754944e-38, %v885
        %v887 = vsel %vm884, %v886, %v882
        %v888 = vmul.f32 1.0, %v887
        %v889 = vrcp.pop %v873
        %v890 = vmul.f32 %v873, %v889
        %v891 = vsub.f32 1.0, %v890
        %v892 = vmul.f32 %v889, %v891
        %v893 = vadd.f32 %v889, %v892
        %vm894 = vweird.f32 %v873
        %vm895 = vweird.f32 %v889
        %vm896 = vmor %vm894, %vm895
        %v897 = vsel %vm896, %v889, %v893
        %v898 = vand.u32 2147483647, %v873
        %vm899 = vcmp.eq.f32.partialorder %v898, 8.507059e+37
        %v900 = vand.u32 %v873, 2147483648
        %v901 = vor.u32 1.1754944e-38, %v900
        %v902 = vsel %vm899, %v901, %v897
        %v903 = vmul.f32 1.0, %v902
        %v904 = vmul.f32 %v864, %v888
        %v905 = vmul.f32 %v865, %v903
        %v906 = vld [vmem:[%s13] sm:$0xff]
        %908 = vset.pattern.permute.xlu0 0
        %909 = vperm.xlu0 %908, %v906
        %v910 = vpop.permute.xlu0 %909
        %v912 = vpack.c.bf16 %v603, %v602
        %v913 = vunpack.c.l.bf16 %v912
        %v914 = vunpack.c.h.bf16 %v912
        %v915 = vld [vmem:[%s9] sm:$0xff]
        %917 = vset.pattern.permute.xlu0 0
        %918 = vperm.xlu0 %917, %v915
        %v919 = vpop.permute.xlu0 %918
        %v921 = vperm.slane %v913, 0
        %v922 = vperm.slane %v914, 0
        %v923 = vmul.f32 %v919, %v921
        %v924 = vmul.f32 %v919, %v922
        %v925 = vadd.f32 %v910, %v923
        %v926 = vadd.f32 %v910, %v924
        %927 = vset.pattern.permute.xlu0 1
        %928 = vperm.xlu0 %927, %v915
        %v929 = vpop.permute.xlu0 %928
        %v931 = vperm.slane %v913, 1
        %v932 = vperm.slane %v914, 1
        %v933 = vmul.f32 %v929, %v931
        %v934 = vmul.f32 %v929, %v932
        %v935 = vadd.f32 %v925, %v933
        %v936 = vadd.f32 %v926, %v934
        %937 = vset.pattern.permute.xlu0 2
        %938 = vperm.xlu0 %937, %v915
        %v939 = vpop.permute.xlu0 %938
        %v941 = vperm.slane %v913, 2
        %v942 = vperm.slane %v914, 2
        %v943 = vmul.f32 %v939, %v941
        %v944 = vmul.f32 %v939, %v942
        %v945 = vadd.f32 %v935, %v943
        %v946 = vadd.f32 %v936, %v944
        %947 = vset.pattern.permute.xlu0 3
        %948 = vperm.xlu0 %947, %v915
        %v949 = vpop.permute.xlu0 %948
        %v951 = vperm.slane %v913, 3
        %v952 = vperm.slane %v914, 3
        %v953 = vmul.f32 %v949, %v951
        %v954 = vmul.f32 %v949, %v952
        %v955 = vadd.f32 %v945, %v953
        %v956 = vadd.f32 %v946, %v954
        %v957 = vld [vmem:[%s10] sm:$0xff]
        %959 = vset.pattern.permute.xlu0 0
        %960 = vperm.xlu0 %959, %v957
        %v961 = vpop.permute.xlu0 %960
        %v963 = vmul.f32 %v961, %v699
        %v964 = vmul.f32 %v961, %v700
        %v965 = vadd.f32 %v955, %v963
        %v966 = vadd.f32 %v956, %v964
        %967 = vset.pattern.permute.xlu0 1
        %968 = vperm.xlu0 %967, %v957
        %v969 = vpop.permute.xlu0 %968
        %v971 = vmul.f32 %v969, %v709
        %v972 = vmul.f32 %v969, %v710
        %v973 = vadd.f32 %v965, %v971
        %v974 = vadd.f32 %v966, %v972
        %975 = vset.pattern.permute.xlu0 2
        %976 = vperm.xlu0 %975, %v957
        %v977 = vpop.permute.xlu0 %976
        %v979 = vmul.f32 %v977, %v719
        %v980 = vmul.f32 %v977, %v720
        %v981 = vadd.f32 %v973, %v979
        %v982 = vadd.f32 %v974, %v980
        %983 = vset.pattern.permute.xlu0 3
        %984 = vperm.xlu0 %983, %v957
        %v985 = vpop.permute.xlu0 %984
        %v987 = vmul.f32 %v985, %v729
        %v988 = vmul.f32 %v985, %v730
        %v989 = vadd.f32 %v981, %v987
        %v990 = vadd.f32 %v982, %v988
        %v991 = vld [vmem:[%s11] sm:$0xff]
        %993 = vset.pattern.permute.xlu0 0
        %994 = vperm.xlu0 %993, %v991
        %v995 = vpop.permute.xlu0 %994
        %v997 = vmul.f32 %v995, %v790
        %v998 = vmul.f32 %v995, %v791
        %v999 = vadd.f32 %v989, %v997
        %v1000 = vadd.f32 %v990, %v998
        %1001 = vset.pattern.permute.xlu0 1
        %1002 = vperm.xlu0 %1001, %v991
        %v1003 = vpop.permute.xlu0 %1002
        %v1005 = vmul.f32 %v1003, %v800
        %v1006 = vmul.f32 %v1003, %v801
        %v1007 = vadd.f32 %v999, %v1005
        %v1008 = vadd.f32 %v1000, %v1006
        %1009 = vset.pattern.permute.xlu0 2
        %1010 = vperm.xlu0 %1009, %v991
        %v1011 = vpop.permute.xlu0 %1010
        %v1013 = vmul.f32 %v1011, %v810
        %v1014 = vmul.f32 %v1011, %v811
        %v1015 = vadd.f32 %v1007, %v1013
        %v1016 = vadd.f32 %v1008, %v1014
        %1017 = vset.pattern.permute.xlu0 3
        %1018 = vperm.xlu0 %1017, %v991
        %v1019 = vpop.permute.xlu0 %1018
        %v1021 = vmul.f32 %v1019, %v820
        %v1022 = vmul.f32 %v1019, %v821
        %v1023 = vadd.f32 %v1015, %v1021
        %v1024 = vadd.f32 %v1016, %v1022
        %1025 = vset.pattern.permute.xlu0 4
        %1026 = vperm.xlu0 %1025, %v991
        %v1027 = vpop.permute.xlu0 %1026
        %v1029 = vmul.f32 %v1027, %v830
        %v1030 = vmul.f32 %v1027, %v831
        %v1031 = vadd.f32 %v1023, %v1029
        %v1032 = vadd.f32 %v1024, %v1030
        %1033 = vset.pattern.permute.xlu0 5
        %1034 = vperm.xlu0 %1033, %v991
        %v1035 = vpop.permute.xlu0 %1034
        %v1037 = vmul.f32 %v1035, %v840
        %v1038 = vmul.f32 %v1035, %v841
        %v1039 = vadd.f32 %v1031, %v1037
        %v1040 = vadd.f32 %v1032, %v1038
        %1041 = vset.pattern.permute.xlu0 6
        %1042 = vperm.xlu0 %1041, %v991
        %v1043 = vpop.permute.xlu0 %1042
        %v1045 = vmul.f32 %v1043, %v850
        %v1046 = vmul.f32 %v1043, %v851
        %v1047 = vadd.f32 %v1039, %v1045
        %v1048 = vadd.f32 %v1040, %v1046
        %1049 = vset.pattern.permute.xlu0 7
        %1050 = vperm.xlu0 %1049, %v991
        %v1051 = vpop.permute.xlu0 %1050
        %v1053 = vmul.f32 %v1051, %v860
        %v1054 = vmul.f32 %v1051, %v861
        %v1055 = vadd.f32 %v1047, %v1053
        %v1056 = vadd.f32 %v1048, %v1054
        %v1057 = vpack.c.bf16 %v905, %v904
        %v1058 = vunpack.c.l.bf16 %v1057
        %v1059 = vunpack.c.h.bf16 %v1057
        %v1060 = vld [vmem:[%s12] sm:$0xff]
        %1062 = vset.pattern.permute.xlu0 0
        %1063 = vperm.xlu0 %1062, %v1060
        %v1064 = vpop.permute.xlu0 %1063
        %v1066 = vperm.slane %v1058, 0
        %v1067 = vperm.slane %v1059, 0
        %v1068 = vmul.f32 %v1064, %v1066
        %v1069 = vmul.f32 %v1064, %v1067
        %v1070 = vadd.f32 %v1055, %v1068
        %v1071 = vadd.f32 %v1056, %v1069
        %1072 = vset.pattern.permute.xlu0 1
        %1073 = vperm.xlu0 %1072, %v1060
        %v1074 = vpop.permute.xlu0 %1073
        %v1076 = vperm.slane %v1058, 1
        %v1077 = vperm.slane %v1059, 1
        %v1078 = vmul.f32 %v1074, %v1076
        %v1079 = vmul.f32 %v1074, %v1077
        %v1080 = vadd.f32 %v1070, %v1078
        %v1081 = vadd.f32 %v1071, %v1079
        %1082 = vset.pattern.permute.xlu0 2
        %1083 = vperm.xlu0 %1082, %v1060
        %v1084 = vpop.permute.xlu0 %1083
        %v1086 = vperm.slane %v1058, 2
        %v1087 = vperm.slane %v1059, 2
        %v1088 = vmul.f32 %v1084, %v1086
        %v1089 = vmul.f32 %v1084, %v1087
        %v1090 = vadd.f32 %v1080, %v1088
        %v1091 = vadd.f32 %v1081, %v1089
        %1092 = vset.pattern.permute.xlu0 3
        %1093 = vperm.xlu0 %1092, %v1060
        %v1094 = vpop.permute.xlu0 %1093
        %v1096 = vperm.slane %v1058, 3
        %v1097 = vperm.slane %v1059, 3
        %v1098 = vmul.f32 %v1094, %v1096
        %v1099 = vmul.f32 %v1094, %v1097
        %v1100 = vadd.f32 %v1090, %v1098
        %v1101 = vadd.f32 %v1091, %v1099
        %1102 = vset.pattern.permute.xlu0 4
        %1103 = vperm.xlu0 %1102, %v1060
        %v1104 = vpop.permute.xlu0 %1103
        %v1106 = vperm.slane %v1058, 4
        %v1107 = vperm.slane %v1059, 4
        %v1108 = vmul.f32 %v1104, %v1106
        %v1109 = vmul.f32 %v1104, %v1107
        %v1110 = vadd.f32 %v1100, %v1108
        %v1111 = vadd.f32 %v1101, %v1109
        %1112 = vset.pattern.permute.xlu0 5
        %1113 = vperm.xlu0 %1112, %v1060
        %v1114 = vpop.permute.xlu0 %1113
        %v1116 = vperm.slane %v1058, 5
        %v1117 = vperm.slane %v1059, 5
        %v1118 = vmul.f32 %v1114, %v1116
        %v1119 = vmul.f32 %v1114, %v1117
        %v1120 = vadd.f32 %v1110, %v1118
        %v1121 = vadd.f32 %v1111, %v1119
        %1122 = vset.pattern.permute.xlu0 6
        %1123 = vperm.xlu0 %1122, %v1060
        %v1124 = vpop.permute.xlu0 %1123
        %v1126 = vperm.slane %v1058, 6
        %v1127 = vperm.slane %v1059, 6
        %v1128 = vmul.f32 %v1124, %v1126
        %v1129 = vmul.f32 %v1124, %v1127
        %v1130 = vadd.f32 %v1120, %v1128
        %v1131 = vadd.f32 %v1121, %v1129
        %1132 = vset.pattern.permute.xlu0 7
        %1133 = vperm.xlu0 %1132, %v1060
        %v1134 = vpop.permute.xlu0 %1133
        %v1136 = vperm.slane %v1058, 7
        %v1137 = vperm.slane %v1059, 7
        %v1138 = vmul.f32 %v1134, %v1136
        %v1139 = vmul.f32 %v1134, %v1137
        %v1140 = vadd.f32 %v1130, %v1138
        %v1141 = vadd.f32 %v1131, %v1139
        %v1142 = vxor.u32 %v1140, 2147483648
        %v1143 = vxor.u32 %v1141, 2147483648
        %v1144 = vmul.f32 %v1142, 1.442695
        %v1145 = vpow.pop %v1144
        %v1146 = vmul.f32 %v1143, 1.442695
        %v1147 = vpow.pop %v1146
        %v1148 = vadd.f32 %v1145, 1.0
        %v1149 = vadd.f32 %v1147, 1.0
        %v1150 = vrcp.pop %v1148
        %v1151 = vmul.f32 %v1148, %v1150
        %v1152 = vsub.f32 1.0, %v1151
        %v1153 = vmul.f32 %v1150, %v1152
        %v1154 = vadd.f32 %v1150, %v1153
        %vm1155 = vweird.f32 %v1148
        %vm1156 = vweird.f32 %v1150
        %vm1157 = vmor %vm1155, %vm1156
        %v1158 = vsel %vm1157, %v1150, %v1154
        %v1159 = vand.u32 2147483647, %v1148
        %vm1160 = vcmp.eq.f32.partialorder %v1159, 8.507059e+37
        %v1161 = vand.u32 %v1148, 2147483648
        %v1162 = vor.u32 1.1754944e-38, %v1161
        %v1163 = vsel %vm1160, %v1162, %v1158
        %v1164 = vmul.f32 1.0, %v1163
        %v1165 = vrcp.pop %v1149
        %v1166 = vmul.f32 %v1149, %v1165
        %v1167 = vsub.f32 1.0, %v1166
        %v1168 = vmul.f32 %v1165, %v1167
        %v1169 = vadd.f32 %v1165, %v1168
        %vm1170 = vweird.f32 %v1149
        %vm1171 = vweird.f32 %v1165
        %vm1172 = vmor %vm1170, %vm1171
        %v1173 = vsel %vm1172, %v1165, %v1169
        %v1174 = vand.u32 2147483647, %v1149
        %vm1175 = vcmp.eq.f32.partialorder %v1174, 8.507059e+37
        %v1176 = vand.u32 %v1149, 2147483648
        %v1177 = vor.u32 1.1754944e-38, %v1176
        %v1178 = vsel %vm1175, %v1177, %v1173
        %v1179 = vmul.f32 1.0, %v1178
        %v1180 = vmul.f32 %v1140, %v1164
        %v1181 = vmul.f32 %v1141, %v1179
        %v1182 = vpack.c.bf16 %v1181, %v1180
        %1183 = vst [vmem:[%s485] sm:$0xff] %v1182
        %s1184 = sand.u32 %s351, 1
        %s1185 = scalar_lea.sflag [#allocation3], %s1184
        %s1186 = sand.u32 %s351, 1
        %s1187 = smul.addr %s1186, 8
        %s1188 = scalar_lea.vmem [#allocation2], %s1187
        // Predicated region
        $region77: #{tpu_custom_call.1} parent=75 // pred_check
          %p1189 = pneg %p361
        $region78: #{tpu_custom_call.1} parent=75 // pred_check_branch
          %1191 = sbr.rel (%p1189) target = $region80
        $region79: #{tpu_custom_call.1} parent=75 // pred_region
          %s1192 = smul.u32 2, %s33
          %1194 = vsyncadd %s1185, 0
          %s1195 = smul.addr %s32, 2
          %s1196 = sadd.s32 %s1192, %s1195
          %s1197 = smul.addr %s1196, 4
          %s1198 = scalar_lea.hbm %s14, %s1197
          %s1200 = sshll.u32 %s1188, 4
          %s1201 = int_to_ptr.vmem [resolvable:$true] %s1200
          %s1202 = sshll.u32 %s1198, 4
          %s1203 = int_to_ptr.hbm [resolvable:$true] %s1202
          %1205 = dma.vmem_to_hbm [thread:$0]  %s1201, 128, %s1203, %s1185
        $region80: #{tpu_custom_call.1} parent=75 // pred_fallthru
          _
      $region76: #{tpu_custom_call.1} parent=5 // pred_fallthru
        _
      %p1206 = scmp.le.s32.totalorder 2, %s23
      // Predicated region
      $region81: #{tpu_custom_call.1} parent=5 // pred_check
        %p1207 = pneg %p1206
      $region82: #{tpu_custom_call.1} parent=5 // pred_check_branch
        %1209 = sbr.rel (%p1207) target = $region84
      $region83: #{tpu_custom_call.1} parent=5 // pred_region
        %s1210 = ssub.s32 %s23, 2
        // Predicated region
        $region85: #{tpu_custom_call.1} parent=83 // pred_check
          %p1211 = pneg %p367
        $region86: #{tpu_custom_call.1} parent=83 // pred_check_branch
          %1213 = sbr.rel (%p1211) target = $region88
        $region87: #{tpu_custom_call.1} parent=83 // pred_region
          %s1214 = sand.u32 %s352, 1
          %s1215 = scalar_lea.sflag [#allocation3], %s1214
          %s1216 = sand.u32 %s352, 1
          %s1217 = smul.addr %s1216, 8
          %s1218 = scalar_lea.vmem [#allocation2], %s1217
          %1220 = dma.done %s1215, 128
        $region88: #{tpu_custom_call.1} parent=83 // pred_fallthru
          _
      $region84: #{tpu_custom_call.1} parent=5 // pred_fallthru
        _
    $region6: #{tpu_custom_call.1} parent=1 // loop_footer
      %s27 = sadd.s32 1, %s23
    $region7: #{tpu_custom_call.1} parent=1 // loop_footer_branch
      %22 = sbr.rel target = $region3
    $region8: #{tpu_custom_call.1} parent=1 // loop_exit
      _
    %1221 = vsyncpa [#allocation3], 1
    %s1222 = scalar_lea.sflag [#allocation3], 1
    %1223 = vsyncpa %s1222, 1

</llo_original>
